<compile_context>
chip_gen: v7x
topology: tpu7x:2x2x1
jax: 0.10.0
libtpu: 0.0.40
codegen_flags: <defaults>
</compile_context>

<pallas_src>
import functools

import numpy as np
import jax
import jax.numpy as jnp
from jax.experimental import pallas as pl
from jax.experimental.pallas import tpu as pltpu


# ----------------------------- Pallas kernel ------------------------------- #

def dqn_kernel(T, H, A, N, seq_ref, flat_ref, wih_ref, whh_ref, bl_ref,
               we_ref, be_ref, w1_ref, b1_ref, w2_ref, b2_ref, w3_ref, b3_ref,
               wo_ref, bo_ref, out_ref):
    B = out_ref.shape[0]

    # ---- Hoisted LSTM input projection: one MXU pass for all T steps.
    # seq_ref is time-major flattened (T*B, D) -> seq_proj (T*B, 4H).
    seq_proj = (jnp.dot(seq_ref[...], wih_ref[...],
                        preferred_element_type=jnp.float32) + bl_ref[...])

    whh = whh_ref[...]                                   # (H, 4H)

    # ---- LSTM recurrence, statically unrolled (T is small & fixed).
    # Only the h-dependent matmul + gate elementwise math sit on the serial path.
    h = jnp.zeros((B, H), jnp.float32)
    c = jnp.zeros((B, H), jnp.float32)
    for t in range(T):
        gates = seq_proj[t * B:(t + 1) * B, :] + jnp.dot(
            h, whh, preferred_element_type=jnp.float32)  # (B, 4H)
        i_g = jax.nn.sigmoid(gates[:, 0 * H:1 * H])
        f_g = jax.nn.sigmoid(gates[:, 1 * H:2 * H])
        g_g = jnp.tanh(gates[:, 2 * H:3 * H])
        o_g = jax.nn.sigmoid(gates[:, 3 * H:4 * H])
        c = f_g * c + i_g * g_g
        h = o_g * jnp.tanh(c)

    # ---- flatten_params_embedding: Linear(2, H)
    emb = (jnp.dot(flat_ref[...], we_ref[...],
                   preferred_element_type=jnp.float32) + be_ref[...])  # (B, H)

    # ---- fc[0]: NoisyLayer(2H -> H) + ReLU.
    # concat(h, emb) @ W1 == h @ W1[:H] + emb @ W1[H:]   (avoids concat)
    w1 = w1_ref[...]                                     # (2H, H)
    x = jnp.maximum(
        jnp.dot(h, w1[0:H, :], preferred_element_type=jnp.float32)
        + jnp.dot(emb, w1[H:2 * H, :], preferred_element_type=jnp.float32)
        + b1_ref[...], 0.0)

    # ---- fc[2], fc[4]: NoisyLayer(H -> H) + ReLU
    x = jnp.maximum(
        jnp.dot(x, w2_ref[...], preferred_element_type=jnp.float32)
        + b2_ref[...], 0.0)
    x = jnp.maximum(
        jnp.dot(x, w3_ref[...], preferred_element_type=jnp.float32)
        + b3_ref[...], 0.0)

    # ---- output_layer fused into a single (H, A*N) matmul -> (B, A*N)
    logits = (jnp.dot(x, wo_ref[...], preferred_element_type=jnp.float32)
              + bo_ref[...])

    # ---- softmax over actions (dim=1 of the (B, A, N) view), per atom,
    # on static lane slices of the fused logits.
    acts = [logits[:, a * N:(a + 1) * N] for a in range(A)]   # A x (B, N)
    m = acts[0]
    for la in acts[1:]:
        m = jnp.maximum(m, la)
    exps = [jnp.exp(la - m) for la in acts]
    denom = exps[0]
    for e in exps[1:]:
        denom = denom + e
    inv = pl.reciprocal(denom, approx=True)                   # EUP slot
    out_ref[...] = jnp.concatenate([e * inv for e in exps], axis=-1)  # (B, A*N)


# ----------------------------- wrapper / glue ------------------------------- #

def dqn_forward(seq, flat, params, num_actions):
    """seq: (B, T, input_dim-2) f32, flat: (B, 2) f32 -> (B, output_dim, num_atoms)."""
    B, T, D = seq.shape
    H = params["whh"].shape[0]
    AN = params["wo_flat"].shape[1]
    A = num_actions
    N = AN // A

    # Pad batch to a full sublane (>=8, multiple of 8); padded rows are garbage
    # but independent per row and sliced off below.
    Bp = max(8, ((B + 7) // 8) * 8)
    if Bp != B:
        seq = jnp.pad(seq, ((0, Bp - B), (0, 0), (0, 0)))
        flat = jnp.pad(flat, ((0, Bp - B), (0, 0)))

    # Time-major, flattened to (T*Bp, D) so the kernel can take static row
    # slices per timestep after the hoisted input projection.
    seq_tm = jnp.transpose(seq, (1, 0, 2)).reshape(T * Bp, D)

    args = (seq_tm, flat,
            params["wih"], params["whh"], params["bl"],
            params["we"], params["be"],
            params["w1"], params["b1"],
            params["w2"], params["b2"],
            params["w3"], params["b3"],
            params["wo_flat"], params["bo_flat"])

    kernel = functools.partial(dqn_kernel, T, H, A, N)
    out_flat = pl.pallas_call(
        kernel,
        out_shape=jax.ShapeDtypeStruct((Bp, A * N), jnp.float32),
        in_specs=[pl.BlockSpec(memory_space=pltpu.MemorySpace.VMEM)] * len(args),
        out_specs=pl.BlockSpec(memory_space=pltpu.MemorySpace.VMEM),
    )(*args)
    # TODO(synk): when B grows large, add a grid axis over batch chunks with
    # dimension_semantics=("parallel",) so v7x's two TensorCores split the work.

    return out_flat[:B].reshape(B, A, N)


def _scale_noise(x):
    return jnp.sign(x) * jnp.sqrt(jnp.abs(x))


def noisy_params(key, fan_in, fan_out, sigma_init=0.017):
    """Training-mode effective NoisyLayer weight/bias (mu + sigma * factorized eps)."""
    k1, k2, k3, k4 = jax.random.split(key, 4)
    mu_range = 1.0 / np.sqrt(fan_in)
    w_mu = jax.random.uniform(k1, (fan_out, fan_in), jnp.float32, -mu_range, mu_range)
    b_mu = jax.random.uniform(k2, (fan_out,), jnp.float32, -mu_range, mu_range)
    w_sigma = jnp.full((fan_out, fan_in), sigma_init / np.sqrt(fan_in), jnp.float32)
    b_sigma = jnp.full((fan_out,), sigma_init / np.sqrt(fan_out), jnp.float32)
    eps_in = _scale_noise(jax.random.normal(k3, (fan_in,), jnp.float32))
    eps_out = _scale_noise(jax.random.normal(k4, (fan_out,), jnp.float32))
    w = w_mu + w_sigma * jnp.outer(eps_out, eps_in)
    b = b_mu + b_sigma * eps_out
    return w.T, b[None, :]                       # (in, out), (1, out)


def make_params(key, d_seq, hidden, n_actions, n_atoms):
    ks = jax.random.split(key, 7)

    def uni(k, shape, scale):
        return jax.random.uniform(k, shape, jnp.float32, -scale, scale)

    # LSTM (xavier_uniform weights, zero biases); gate order [i, f, g, o]
    wih = uni(ks[0], (d_seq, 4 * hidden), np.sqrt(6.0 / (d_seq + 4 * hidden)))
    whh = uni(ks[1], (hidden, 4 * hidden), np.sqrt(6.0 / (hidden + 4 * hidden)))
    bl = jnp.zeros((1, 4 * hidden), jnp.float32)

    # flatten_params_embedding: Linear(2, hidden), zero bias
    we = uni(ks[2], (2, hidden), np.sqrt(6.0 / 2.0))
    be = jnp.zeros((1, hidden), jnp.float32)

    # Noisy fc stack
    w1, b1 = noisy_params(ks[3], 2 * hidden, hidden)
    w2, b2 = noisy_params(ks[4], hidden, hidden)
    w3, b3 = noisy_params(ks[5], hidden, hidden)

    # output_layer: Linear(hidden, A*N), zero bias.  Torch layout (A*N, hidden);
    # column j of wo_flat corresponds to flat output index j = a*N + n.
    wo_t = uni(ks[6], (n_actions * n_atoms, hidden), np.sqrt(6.0 / hidden))
    wo_flat = wo_t.T                                           # (H, A*N)
    bo_flat = jnp.zeros((1, n_actions * n_atoms), jnp.float32)

    return dict(wih=wih, whh=whh, bl=bl, we=we, be=be,
                w1=w1, b1=b1, w2=w2, b2=b2, w3=w3, b3=b3,
                wo_flat=wo_flat, bo_flat=bo_flat)


def dqn_reference(seq, flat, p, n_actions, n_atoms):
    """Pure-JAX reference mirroring the PyTorch forward."""
    B = seq.shape[0]
    H = p["whh"].shape[0]

    def step(carry, x_t):
        h, c = carry
        gates = x_t @ p["wih"] + h @ p["whh"] + p["bl"]
        i = jax.nn.sigmoid(gates[:, :H])
        f = jax.nn.sigmoid(gates[:, H:2 * H])
        g = jnp.tanh(gates[:, 2 * H:3 * H])
        o = jax.nn.sigmoid(gates[:, 3 * H:])
        c = f * c + i * g
        h = o * jnp.tanh(c)
        return (h, c), None

    (h, _), _ = jax.lax.scan(step,
                             (jnp.zeros((B, H), jnp.float32),
                              jnp.zeros((B, H), jnp.float32)),
                             jnp.transpose(seq, (1, 0, 2)))
    emb = flat @ p["we"] + p["be"]
    feat = jnp.concatenate([h, emb], axis=1)
    x = jnp.maximum(feat @ p["w1"] + p["b1"], 0.0)
    x = jnp.maximum(x @ p["w2"] + p["b2"], 0.0)
    x = jnp.maximum(x @ p["w3"] + p["b3"], 0.0)
    logits = (x @ p["wo_flat"] + p["bo_flat"]).reshape(B, n_actions, n_atoms)
    return jax.nn.softmax(logits, axis=1)        # softmax over output_dim, per atom


if __name__ == "__main__":
    # Small shapes: batch=2, seq_len=8, input_dim=6 (=> LSTM input 4), hidden=32,
    # output_dim=4, num_atoms=51.
    B, T, INPUT_DIM, HIDDEN, N_ACT, N_ATOMS = 2, 8, 6, 32, 4, 51
    D_SEQ = INPUT_DIM - 2

    key = jax.random.PRNGKey(0)
    k_par, k_seq, k_flat = jax.random.split(key, 3)
    params = make_params(k_par, D_SEQ, HIDDEN, N_ACT, N_ATOMS)
    seq = jax.random.normal(k_seq, (B, T, D_SEQ), jnp.float32)
    flat = jax.random.normal(k_flat, (B, 2), jnp.float32)

    out = dqn_forward(seq, flat, params, N_ACT)
    out = jax.block_until_ready(out)

    ref = dqn_reference(seq, flat, params, N_ACT, N_ATOMS)
    assert out.shape == (B, N_ACT, N_ATOMS)
    np.testing.assert_allclose(np.asarray(out), np.asarray(ref), rtol=2e-3, atol=2e-3)
    np.testing.assert_allclose(np.asarray(out.sum(axis=1)),
                               np.ones((B, N_ATOMS), np.float32),
                               rtol=2e-3, atol=2e-3)
    print("KERNEL_OK")
</pallas_src>

<mosaic_0001>
module attributes {stable_mosaic.version = 11 : i64} {
  func.func @dqn_kernel(%arg0: memref<64x4xf32, #tpu.memory_space<vmem>>, %arg1: memref<8x2xf32, #tpu.memory_space<vmem>>, %arg2: memref<4x128xf32, #tpu.memory_space<vmem>>, %arg3: memref<32x128xf32, #tpu.memory_space<vmem>>, %arg4: memref<1x128xf32, #tpu.memory_space<vmem>>, %arg5: memref<2x32xf32, #tpu.memory_space<vmem>>, %arg6: memref<1x32xf32, #tpu.memory_space<vmem>>, %arg7: memref<64x32xf32, #tpu.memory_space<vmem>>, %arg8: memref<1x32xf32, #tpu.memory_space<vmem>>, %arg9: memref<32x32xf32, #tpu.memory_space<vmem>>, %arg10: memref<1x32xf32, #tpu.memory_space<vmem>>, %arg11: memref<32x32xf32, #tpu.memory_space<vmem>>, %arg12: memref<1x32xf32, #tpu.memory_space<vmem>>, %arg13: memref<32x204xf32, #tpu.memory_space<vmem>>, %arg14: memref<1x204xf32, #tpu.memory_space<vmem>>, %arg15: memref<8x204xf32, #tpu.memory_space<vmem>>) attributes {dimension_semantics = [], scalar_prefetch = 0 : i64, scratch_operands = 0 : i64, tpu.core_type = #tpu.core_type<tc>} {
    %c0 = arith.constant 0 : index
    %c0_0 = arith.constant 0 : index
    %0 = vector.load %arg0[%c0, %c0_0] : memref<64x4xf32, #tpu.memory_space<vmem>>, vector<64x4xf32>
    %c0_1 = arith.constant 0 : index
    %c0_2 = arith.constant 0 : index
    %1 = vector.load %arg2[%c0_1, %c0_2] : memref<4x128xf32, #tpu.memory_space<vmem>>, vector<4x128xf32>
    %cst = arith.constant dense<0.000000e+00> : vector<64x128xf32>
    %2 = tpu.matmul %0, %1, %cst {dimension_numbers = #tpu.dot_dimension_numbers<[1], [0], [0], [1], [0, 0, 1, 1], [], []>} : vector<64x4xf32>, vector<4x128xf32>, vector<64x128xf32> -> vector<64x128xf32>
    %c0_3 = arith.constant 0 : index
    %c0_4 = arith.constant 0 : index
    %3 = vector.load %arg4[%c0_3, %c0_4] : memref<1x128xf32, #tpu.memory_space<vmem>>, vector<1x128xf32>
    %4 = vector.broadcast %3 : vector<1x128xf32> to vector<64x128xf32>
    %5 = arith.addf %2, %4 : vector<64x128xf32>
    %c0_5 = arith.constant 0 : index
    %c0_6 = arith.constant 0 : index
    %6 = vector.load %arg3[%c0_5, %c0_6] : memref<32x128xf32, #tpu.memory_space<vmem>>, vector<32x128xf32>
    %cst_7 = arith.constant 0.000000e+00 : f32
    %7 = vector.broadcast %cst_7 : f32 to vector<8x32xf32>
    %cst_8 = arith.constant 0.000000e+00 : f32
    %8 = vector.broadcast %cst_8 : f32 to vector<8x32xf32>
    %9 = vector.extract_strided_slice %5 {offsets = [0, 0], sizes = [8, 128], strides = [1, 1]} : vector<64x128xf32> to vector<8x128xf32>
    %cst_9 = arith.constant dense<0.000000e+00> : vector<8x128xf32>
    %10 = tpu.matmul %7, %6, %cst_9 {dimension_numbers = #tpu.dot_dimension_numbers<[1], [0], [0], [1], [0, 0, 1, 1], [], []>} : vector<8x32xf32>, vector<32x128xf32>, vector<8x128xf32> -> vector<8x128xf32>
    %11 = arith.addf %9, %10 : vector<8x128xf32>
    %12 = vector.extract_strided_slice %11 {offsets = [0, 0], sizes = [8, 32], strides = [1, 1]} : vector<8x128xf32> to vector<8x32xf32>
    %13 = arith.negf %12 : vector<8x32xf32>
    %14 = math.exp %13 : vector<8x32xf32>
    %cst_10 = arith.constant 1.000000e+00 : f32
    %15 = vector.broadcast %cst_10 : f32 to vector<8x32xf32>
    %16 = arith.addf %15, %14 : vector<8x32xf32>
    %17 = arith.divf %15, %16 : vector<8x32xf32>
    %18 = vector.extract_strided_slice %11 {offsets = [0, 32], sizes = [8, 32], strides = [1, 1]} : vector<8x128xf32> to vector<8x32xf32>
    %19 = arith.negf %18 : vector<8x32xf32>
    %20 = math.exp %19 : vector<8x32xf32>
    %cst_11 = arith.constant 1.000000e+00 : f32
    %21 = vector.broadcast %cst_11 : f32 to vector<8x32xf32>
    %22 = arith.addf %21, %20 : vector<8x32xf32>
    %23 = arith.divf %21, %22 : vector<8x32xf32>
    %24 = vector.extract_strided_slice %11 {offsets = [0, 64], sizes = [8, 32], strides = [1, 1]} : vector<8x128xf32> to vector<8x32xf32>
    %25 = math.tanh %24 : vector<8x32xf32>
    %26 = vector.extract_strided_slice %11 {offsets = [0, 96], sizes = [8, 32], strides = [1, 1]} : vector<8x128xf32> to vector<8x32xf32>
    %27 = arith.negf %26 : vector<8x32xf32>
    %28 = math.exp %27 : vector<8x32xf32>
    %cst_12 = arith.constant 1.000000e+00 : f32
    %29 = vector.broadcast %cst_12 : f32 to vector<8x32xf32>
    %30 = arith.addf %29, %28 : vector<8x32xf32>
    %31 = arith.divf %29, %30 : vector<8x32xf32>
    %32 = arith.mulf %23, %8 : vector<8x32xf32>
    %33 = arith.mulf %17, %25 : vector<8x32xf32>
    %34 = arith.addf %32, %33 : vector<8x32xf32>
    %35 = math.tanh %34 : vector<8x32xf32>
    %36 = arith.mulf %31, %35 : vector<8x32xf32>
    %37 = vector.extract_strided_slice %5 {offsets = [8, 0], sizes = [8, 128], strides = [1, 1]} : vector<64x128xf32> to vector<8x128xf32>
    %cst_13 = arith.constant dense<0.000000e+00> : vector<8x128xf32>
    %38 = tpu.matmul %36, %6, %cst_13 {dimension_numbers = #tpu.dot_dimension_numbers<[1], [0], [0], [1], [0, 0, 1, 1], [], []>} : vector<8x32xf32>, vector<32x128xf32>, vector<8x128xf32> -> vector<8x128xf32>
    %39 = arith.addf %37, %38 : vector<8x128xf32>
    %40 = vector.extract_strided_slice %39 {offsets = [0, 0], sizes = [8, 32], strides = [1, 1]} : vector<8x128xf32> to vector<8x32xf32>
    %41 = arith.negf %40 : vector<8x32xf32>
    %42 = math.exp %41 : vector<8x32xf32>
    %cst_14 = arith.constant 1.000000e+00 : f32
    %43 = vector.broadcast %cst_14 : f32 to vector<8x32xf32>
    %44 = arith.addf %43, %42 : vector<8x32xf32>
    %45 = arith.divf %43, %44 : vector<8x32xf32>
    %46 = vector.extract_strided_slice %39 {offsets = [0, 32], sizes = [8, 32], strides = [1, 1]} : vector<8x128xf32> to vector<8x32xf32>
    %47 = arith.negf %46 : vector<8x32xf32>
    %48 = math.exp %47 : vector<8x32xf32>
    %cst_15 = arith.constant 1.000000e+00 : f32
    %49 = vector.broadcast %cst_15 : f32 to vector<8x32xf32>
    %50 = arith.addf %49, %48 : vector<8x32xf32>
    %51 = arith.divf %49, %50 : vector<8x32xf32>
    %52 = vector.extract_strided_slice %39 {offsets = [0, 64], sizes = [8, 32], strides = [1, 1]} : vector<8x128xf32> to vector<8x32xf32>
    %53 = math.tanh %52 : vector<8x32xf32>
    %54 = vector.extract_strided_slice %39 {offsets = [0, 96], sizes = [8, 32], strides = [1, 1]} : vector<8x128xf32> to vector<8x32xf32>
    %55 = arith.negf %54 : vector<8x32xf32>
    %56 = math.exp %55 : vector<8x32xf32>
    %cst_16 = arith.constant 1.000000e+00 : f32
    %57 = vector.broadcast %cst_16 : f32 to vector<8x32xf32>
    %58 = arith.addf %57, %56 : vector<8x32xf32>
    %59 = arith.divf %57, %58 : vector<8x32xf32>
    %60 = arith.mulf %51, %34 : vector<8x32xf32>
    %61 = arith.mulf %45, %53 : vector<8x32xf32>
    %62 = arith.addf %60, %61 : vector<8x32xf32>
    %63 = math.tanh %62 : vector<8x32xf32>
    %64 = arith.mulf %59, %63 : vector<8x32xf32>
    %65 = vector.extract_strided_slice %5 {offsets = [16, 0], sizes = [8, 128], strides = [1, 1]} : vector<64x128xf32> to vector<8x128xf32>
    %cst_17 = arith.constant dense<0.000000e+00> : vector<8x128xf32>
    %66 = tpu.matmul %64, %6, %cst_17 {dimension_numbers = #tpu.dot_dimension_numbers<[1], [0], [0], [1], [0, 0, 1, 1], [], []>} : vector<8x32xf32>, vector<32x128xf32>, vector<8x128xf32> -> vector<8x128xf32>
    %67 = arith.addf %65, %66 : vector<8x128xf32>
    %68 = vector.extract_strided_slice %67 {offsets = [0, 0], sizes = [8, 32], strides = [1, 1]} : vector<8x128xf32> to vector<8x32xf32>
    %69 = arith.negf %68 : vector<8x32xf32>
    %70 = math.exp %69 : vector<8x32xf32>
    %cst_18 = arith.constant 1.000000e+00 : f32
    %71 = vector.broadcast %cst_18 : f32 to vector<8x32xf32>
    %72 = arith.addf %71, %70 : vector<8x32xf32>
    %73 = arith.divf %71, %72 : vector<8x32xf32>
    %74 = vector.extract_strided_slice %67 {offsets = [0, 32], sizes = [8, 32], strides = [1, 1]} : vector<8x128xf32> to vector<8x32xf32>
    %75 = arith.negf %74 : vector<8x32xf32>
    %76 = math.exp %75 : vector<8x32xf32>
    %cst_19 = arith.constant 1.000000e+00 : f32
    %77 = vector.broadcast %cst_19 : f32 to vector<8x32xf32>
    %78 = arith.addf %77, %76 : vector<8x32xf32>
    %79 = arith.divf %77, %78 : vector<8x32xf32>
    %80 = vector.extract_strided_slice %67 {offsets = [0, 64], sizes = [8, 32], strides = [1, 1]} : vector<8x128xf32> to vector<8x32xf32>
    %81 = math.tanh %80 : vector<8x32xf32>
    %82 = vector.extract_strided_slice %67 {offsets = [0, 96], sizes = [8, 32], strides = [1, 1]} : vector<8x128xf32> to vector<8x32xf32>
    %83 = arith.negf %82 : vector<8x32xf32>
    %84 = math.exp %83 : vector<8x32xf32>
    %cst_20 = arith.constant 1.000000e+00 : f32
    %85 = vector.broadcast %cst_20 : f32 to vector<8x32xf32>
    %86 = arith.addf %85, %84 : vector<8x32xf32>
    %87 = arith.divf %85, %86 : vector<8x32xf32>
    %88 = arith.mulf %79, %62 : vector<8x32xf32>
    %89 = arith.mulf %73, %81 : vector<8x32xf32>
    %90 = arith.addf %88, %89 : vector<8x32xf32>
    %91 = math.tanh %90 : vector<8x32xf32>
    %92 = arith.mulf %87, %91 : vector<8x32xf32>
    %93 = vector.extract_strided_slice %5 {offsets = [24, 0], sizes = [8, 128], strides = [1, 1]} : vector<64x128xf32> to vector<8x128xf32>
    %cst_21 = arith.constant dense<0.000000e+00> : vector<8x128xf32>
    %94 = tpu.matmul %92, %6, %cst_21 {dimension_numbers = #tpu.dot_dimension_numbers<[1], [0], [0], [1], [0, 0, 1, 1], [], []>} : vector<8x32xf32>, vector<32x128xf32>, vector<8x128xf32> -> vector<8x128xf32>
    %95 = arith.addf %93, %94 : vector<8x128xf32>
    %96 = vector.extract_strided_slice %95 {offsets = [0, 0], sizes = [8, 32], strides = [1, 1]} : vector<8x128xf32> to vector<8x32xf32>
    %97 = arith.negf %96 : vector<8x32xf32>
    %98 = math.exp %97 : vector<8x32xf32>
    %cst_22 = arith.constant 1.000000e+00 : f32
    %99 = vector.broadcast %cst_22 : f32 to vector<8x32xf32>
    %100 = arith.addf %99, %98 : vector<8x32xf32>
    %101 = arith.divf %99, %100 : vector<8x32xf32>
    %102 = vector.extract_strided_slice %95 {offsets = [0, 32], sizes = [8, 32], strides = [1, 1]} : vector<8x128xf32> to vector<8x32xf32>
    %103 = arith.negf %102 : vector<8x32xf32>
    %104 = math.exp %103 : vector<8x32xf32>
    %cst_23 = arith.constant 1.000000e+00 : f32
    %105 = vector.broadcast %cst_23 : f32 to vector<8x32xf32>
    %106 = arith.addf %105, %104 : vector<8x32xf32>
    %107 = arith.divf %105, %106 : vector<8x32xf32>
    %108 = vector.extract_strided_slice %95 {offsets = [0, 64], sizes = [8, 32], strides = [1, 1]} : vector<8x128xf32> to vector<8x32xf32>
    %109 = math.tanh %108 : vector<8x32xf32>
    %110 = vector.extract_strided_slice %95 {offsets = [0, 96], sizes = [8, 32], strides = [1, 1]} : vector<8x128xf32> to vector<8x32xf32>
    %111 = arith.negf %110 : vector<8x32xf32>
    %112 = math.exp %111 : vector<8x32xf32>
    %cst_24 = arith.constant 1.000000e+00 : f32
    %113 = vector.broadcast %cst_24 : f32 to vector<8x32xf32>
    %114 = arith.addf %113, %112 : vector<8x32xf32>
    %115 = arith.divf %113, %114 : vector<8x32xf32>
    %116 = arith.mulf %107, %90 : vector<8x32xf32>
    %117 = arith.mulf %101, %109 : vector<8x32xf32>
    %118 = arith.addf %116, %117 : vector<8x32xf32>
    %119 = math.tanh %118 : vector<8x32xf32>
    %120 = arith.mulf %115, %119 : vector<8x32xf32>
    %121 = vector.extract_strided_slice %5 {offsets = [32, 0], sizes = [8, 128], strides = [1, 1]} : vector<64x128xf32> to vector<8x128xf32>
    %cst_25 = arith.constant dense<0.000000e+00> : vector<8x128xf32>
    %122 = tpu.matmul %120, %6, %cst_25 {dimension_numbers = #tpu.dot_dimension_numbers<[1], [0], [0], [1], [0, 0, 1, 1], [], []>} : vector<8x32xf32>, vector<32x128xf32>, vector<8x128xf32> -> vector<8x128xf32>
    %123 = arith.addf %121, %122 : vector<8x128xf32>
    %124 = vector.extract_strided_slice %123 {offsets = [0, 0], sizes = [8, 32], strides = [1, 1]} : vector<8x128xf32> to vector<8x32xf32>
    %125 = arith.negf %124 : vector<8x32xf32>
    %126 = math.exp %125 : vector<8x32xf32>
    %cst_26 = arith.constant 1.000000e+00 : f32
    %127 = vector.broadcast %cst_26 : f32 to vector<8x32xf32>
    %128 = arith.addf %127, %126 : vector<8x32xf32>
    %129 = arith.divf %127, %128 : vector<8x32xf32>
    %130 = vector.extract_strided_slice %123 {offsets = [0, 32], sizes = [8, 32], strides = [1, 1]} : vector<8x128xf32> to vector<8x32xf32>
    %131 = arith.negf %130 : vector<8x32xf32>
    %132 = math.exp %131 : vector<8x32xf32>
    %cst_27 = arith.constant 1.000000e+00 : f32
    %133 = vector.broadcast %cst_27 : f32 to vector<8x32xf32>
    %134 = arith.addf %133, %132 : vector<8x32xf32>
    %135 = arith.divf %133, %134 : vector<8x32xf32>
    %136 = vector.extract_strided_slice %123 {offsets = [0, 64], sizes = [8, 32], strides = [1, 1]} : vector<8x128xf32> to vector<8x32xf32>
    %137 = math.tanh %136 : vector<8x32xf32>
    %138 = vector.extract_strided_slice %123 {offsets = [0, 96], sizes = [8, 32], strides = [1, 1]} : vector<8x128xf32> to vector<8x32xf32>
    %139 = arith.negf %138 : vector<8x32xf32>
    %140 = math.exp %139 : vector<8x32xf32>
    %cst_28 = arith.constant 1.000000e+00 : f32
    %141 = vector.broadcast %cst_28 : f32 to vector<8x32xf32>
    %142 = arith.addf %141, %140 : vector<8x32xf32>
    %143 = arith.divf %141, %142 : vector<8x32xf32>
    %144 = arith.mulf %135, %118 : vector<8x32xf32>
    %145 = arith.mulf %129, %137 : vector<8x32xf32>
    %146 = arith.addf %144, %145 : vector<8x32xf32>
    %147 = math.tanh %146 : vector<8x32xf32>
    %148 = arith.mulf %143, %147 : vector<8x32xf32>
    %149 = vector.extract_strided_slice %5 {offsets = [40, 0], sizes = [8, 128], strides = [1, 1]} : vector<64x128xf32> to vector<8x128xf32>
    %cst_29 = arith.constant dense<0.000000e+00> : vector<8x128xf32>
    %150 = tpu.matmul %148, %6, %cst_29 {dimension_numbers = #tpu.dot_dimension_numbers<[1], [0], [0], [1], [0, 0, 1, 1], [], []>} : vector<8x32xf32>, vector<32x128xf32>, vector<8x128xf32> -> vector<8x128xf32>
    %151 = arith.addf %149, %150 : vector<8x128xf32>
    %152 = vector.extract_strided_slice %151 {offsets = [0, 0], sizes = [8, 32], strides = [1, 1]} : vector<8x128xf32> to vector<8x32xf32>
    %153 = arith.negf %152 : vector<8x32xf32>
    %154 = math.exp %153 : vector<8x32xf32>
    %cst_30 = arith.constant 1.000000e+00 : f32
    %155 = vector.broadcast %cst_30 : f32 to vector<8x32xf32>
    %156 = arith.addf %155, %154 : vector<8x32xf32>
    %157 = arith.divf %155, %156 : vector<8x32xf32>
    %158 = vector.extract_strided_slice %151 {offsets = [0, 32], sizes = [8, 32], strides = [1, 1]} : vector<8x128xf32> to vector<8x32xf32>
    %159 = arith.negf %158 : vector<8x32xf32>
    %160 = math.exp %159 : vector<8x32xf32>
    %cst_31 = arith.constant 1.000000e+00 : f32
    %161 = vector.broadcast %cst_31 : f32 to vector<8x32xf32>
    %162 = arith.addf %161, %160 : vector<8x32xf32>
    %163 = arith.divf %161, %162 : vector<8x32xf32>
    %164 = vector.extract_strided_slice %151 {offsets = [0, 64], sizes = [8, 32], strides = [1, 1]} : vector<8x128xf32> to vector<8x32xf32>
    %165 = math.tanh %164 : vector<8x32xf32>
    %166 = vector.extract_strided_slice %151 {offsets = [0, 96], sizes = [8, 32], strides = [1, 1]} : vector<8x128xf32> to vector<8x32xf32>
    %167 = arith.negf %166 : vector<8x32xf32>
    %168 = math.exp %167 : vector<8x32xf32>
    %cst_32 = arith.constant 1.000000e+00 : f32
    %169 = vector.broadcast %cst_32 : f32 to vector<8x32xf32>
    %170 = arith.addf %169, %168 : vector<8x32xf32>
    %171 = arith.divf %169, %170 : vector<8x32xf32>
    %172 = arith.mulf %163, %146 : vector<8x32xf32>
    %173 = arith.mulf %157, %165 : vector<8x32xf32>
    %174 = arith.addf %172, %173 : vector<8x32xf32>
    %175 = math.tanh %174 : vector<8x32xf32>
    %176 = arith.mulf %171, %175 : vector<8x32xf32>
    %177 = vector.extract_strided_slice %5 {offsets = [48, 0], sizes = [8, 128], strides = [1, 1]} : vector<64x128xf32> to vector<8x128xf32>
    %cst_33 = arith.constant dense<0.000000e+00> : vector<8x128xf32>
    %178 = tpu.matmul %176, %6, %cst_33 {dimension_numbers = #tpu.dot_dimension_numbers<[1], [0], [0], [1], [0, 0, 1, 1], [], []>} : vector<8x32xf32>, vector<32x128xf32>, vector<8x128xf32> -> vector<8x128xf32>
    %179 = arith.addf %177, %178 : vector<8x128xf32>
    %180 = vector.extract_strided_slice %179 {offsets = [0, 0], sizes = [8, 32], strides = [1, 1]} : vector<8x128xf32> to vector<8x32xf32>
    %181 = arith.negf %180 : vector<8x32xf32>
    %182 = math.exp %181 : vector<8x32xf32>
    %cst_34 = arith.constant 1.000000e+00 : f32
    %183 = vector.broadcast %cst_34 : f32 to vector<8x32xf32>
    %184 = arith.addf %183, %182 : vector<8x32xf32>
    %185 = arith.divf %183, %184 : vector<8x32xf32>
    %186 = vector.extract_strided_slice %179 {offsets = [0, 32], sizes = [8, 32], strides = [1, 1]} : vector<8x128xf32> to vector<8x32xf32>
    %187 = arith.negf %186 : vector<8x32xf32>
    %188 = math.exp %187 : vector<8x32xf32>
    %cst_35 = arith.constant 1.000000e+00 : f32
    %189 = vector.broadcast %cst_35 : f32 to vector<8x32xf32>
    %190 = arith.addf %189, %188 : vector<8x32xf32>
    %191 = arith.divf %189, %190 : vector<8x32xf32>
    %192 = vector.extract_strided_slice %179 {offsets = [0, 64], sizes = [8, 32], strides = [1, 1]} : vector<8x128xf32> to vector<8x32xf32>
    %193 = math.tanh %192 : vector<8x32xf32>
    %194 = vector.extract_strided_slice %179 {offsets = [0, 96], sizes = [8, 32], strides = [1, 1]} : vector<8x128xf32> to vector<8x32xf32>
    %195 = arith.negf %194 : vector<8x32xf32>
    %196 = math.exp %195 : vector<8x32xf32>
    %cst_36 = arith.constant 1.000000e+00 : f32
    %197 = vector.broadcast %cst_36 : f32 to vector<8x32xf32>
    %198 = arith.addf %197, %196 : vector<8x32xf32>
    %199 = arith.divf %197, %198 : vector<8x32xf32>
    %200 = arith.mulf %191, %174 : vector<8x32xf32>
    %201 = arith.mulf %185, %193 : vector<8x32xf32>
    %202 = arith.addf %200, %201 : vector<8x32xf32>
    %203 = math.tanh %202 : vector<8x32xf32>
    %204 = arith.mulf %199, %203 : vector<8x32xf32>
    %205 = vector.extract_strided_slice %5 {offsets = [56, 0], sizes = [8, 128], strides = [1, 1]} : vector<64x128xf32> to vector<8x128xf32>
    %cst_37 = arith.constant dense<0.000000e+00> : vector<8x128xf32>
    %206 = tpu.matmul %204, %6, %cst_37 {dimension_numbers = #tpu.dot_dimension_numbers<[1], [0], [0], [1], [0, 0, 1, 1], [], []>} : vector<8x32xf32>, vector<32x128xf32>, vector<8x128xf32> -> vector<8x128xf32>
    %207 = arith.addf %205, %206 : vector<8x128xf32>
    %208 = vector.extract_strided_slice %207 {offsets = [0, 0], sizes = [8, 32], strides = [1, 1]} : vector<8x128xf32> to vector<8x32xf32>
    %209 = arith.negf %208 : vector<8x32xf32>
    %210 = math.exp %209 : vector<8x32xf32>
    %cst_38 = arith.constant 1.000000e+00 : f32
    %211 = vector.broadcast %cst_38 : f32 to vector<8x32xf32>
    %212 = arith.addf %211, %210 : vector<8x32xf32>
    %213 = arith.divf %211, %212 : vector<8x32xf32>
    %214 = vector.extract_strided_slice %207 {offsets = [0, 32], sizes = [8, 32], strides = [1, 1]} : vector<8x128xf32> to vector<8x32xf32>
    %215 = arith.negf %214 : vector<8x32xf32>
    %216 = math.exp %215 : vector<8x32xf32>
    %cst_39 = arith.constant 1.000000e+00 : f32
    %217 = vector.broadcast %cst_39 : f32 to vector<8x32xf32>
    %218 = arith.addf %217, %216 : vector<8x32xf32>
    %219 = arith.divf %217, %218 : vector<8x32xf32>
    %220 = vector.extract_strided_slice %207 {offsets = [0, 64], sizes = [8, 32], strides = [1, 1]} : vector<8x128xf32> to vector<8x32xf32>
    %221 = math.tanh %220 : vector<8x32xf32>
    %222 = vector.extract_strided_slice %207 {offsets = [0, 96], sizes = [8, 32], strides = [1, 1]} : vector<8x128xf32> to vector<8x32xf32>
    %223 = arith.negf %222 : vector<8x32xf32>
    %224 = math.exp %223 : vector<8x32xf32>
    %cst_40 = arith.constant 1.000000e+00 : f32
    %225 = vector.broadcast %cst_40 : f32 to vector<8x32xf32>
    %226 = arith.addf %225, %224 : vector<8x32xf32>
    %227 = arith.divf %225, %226 : vector<8x32xf32>
    %228 = arith.mulf %219, %202 : vector<8x32xf32>
    %229 = arith.mulf %213, %221 : vector<8x32xf32>
    %230 = arith.addf %228, %229 : vector<8x32xf32>
    %231 = math.tanh %230 : vector<8x32xf32>
    %232 = arith.mulf %227, %231 : vector<8x32xf32>
    %c0_41 = arith.constant 0 : index
    %c0_42 = arith.constant 0 : index
    %233 = vector.load %arg1[%c0_41, %c0_42] : memref<8x2xf32, #tpu.memory_space<vmem>>, vector<8x2xf32>
    %c0_43 = arith.constant 0 : index
    %c0_44 = arith.constant 0 : index
    %234 = vector.load %arg5[%c0_43, %c0_44] : memref<2x32xf32, #tpu.memory_space<vmem>>, vector<2x32xf32>
    %cst_45 = arith.constant dense<0.000000e+00> : vector<8x32xf32>
    %235 = tpu.matmul %233, %234, %cst_45 {dimension_numbers = #tpu.dot_dimension_numbers<[1], [0], [0], [1], [0, 0, 1, 1], [], []>} : vector<8x2xf32>, vector<2x32xf32>, vector<8x32xf32> -> vector<8x32xf32>
    %c0_46 = arith.constant 0 : index
    %c0_47 = arith.constant 0 : index
    %236 = vector.load %arg6[%c0_46, %c0_47] : memref<1x32xf32, #tpu.memory_space<vmem>>, vector<1x32xf32>
    %237 = vector.broadcast %236 : vector<1x32xf32> to vector<8x32xf32>
    %238 = arith.addf %235, %237 : vector<8x32xf32>
    %c0_48 = arith.constant 0 : index
    %c0_49 = arith.constant 0 : index
    %239 = vector.load %arg7[%c0_48, %c0_49] : memref<64x32xf32, #tpu.memory_space<vmem>>, vector<64x32xf32>
    %240 = vector.extract_strided_slice %239 {offsets = [0, 0], sizes = [32, 32], strides = [1, 1]} : vector<64x32xf32> to vector<32x32xf32>
    %cst_50 = arith.constant dense<0.000000e+00> : vector<8x32xf32>
    %241 = tpu.matmul %232, %240, %cst_50 {dimension_numbers = #tpu.dot_dimension_numbers<[1], [0], [0], [1], [0, 0, 1, 1], [], []>} : vector<8x32xf32>, vector<32x32xf32>, vector<8x32xf32> -> vector<8x32xf32>
    %242 = vector.extract_strided_slice %239 {offsets = [32, 0], sizes = [32, 32], strides = [1, 1]} : vector<64x32xf32> to vector<32x32xf32>
    %cst_51 = arith.constant dense<0.000000e+00> : vector<8x32xf32>
    %243 = tpu.matmul %238, %242, %cst_51 {dimension_numbers = #tpu.dot_dimension_numbers<[1], [0], [0], [1], [0, 0, 1, 1], [], []>} : vector<8x32xf32>, vector<32x32xf32>, vector<8x32xf32> -> vector<8x32xf32>
    %244 = arith.addf %241, %243 : vector<8x32xf32>
    %c0_52 = arith.constant 0 : index
    %c0_53 = arith.constant 0 : index
    %245 = vector.load %arg8[%c0_52, %c0_53] : memref<1x32xf32, #tpu.memory_space<vmem>>, vector<1x32xf32>
    %246 = vector.broadcast %245 : vector<1x32xf32> to vector<8x32xf32>
    %247 = arith.addf %244, %246 : vector<8x32xf32>
    %cst_54 = arith.constant 0.000000e+00 : f32
    %248 = vector.broadcast %cst_54 : f32 to vector<8x32xf32>
    %249 = arith.maximumf %247, %248 : vector<8x32xf32>
    %c0_55 = arith.constant 0 : index
    %c0_56 = arith.constant 0 : index
    %250 = vector.load %arg9[%c0_55, %c0_56] : memref<32x32xf32, #tpu.memory_space<vmem>>, vector<32x32xf32>
    %cst_57 = arith.constant dense<0.000000e+00> : vector<8x32xf32>
    %251 = tpu.matmul %249, %250, %cst_57 {dimension_numbers = #tpu.dot_dimension_numbers<[1], [0], [0], [1], [0, 0, 1, 1], [], []>} : vector<8x32xf32>, vector<32x32xf32>, vector<8x32xf32> -> vector<8x32xf32>
    %c0_58 = arith.constant 0 : index
    %c0_59 = arith.constant 0 : index
    %252 = vector.load %arg10[%c0_58, %c0_59] : memref<1x32xf32, #tpu.memory_space<vmem>>, vector<1x32xf32>
    %253 = vector.broadcast %252 : vector<1x32xf32> to vector<8x32xf32>
    %254 = arith.addf %251, %253 : vector<8x32xf32>
    %cst_60 = arith.constant 0.000000e+00 : f32
    %255 = vector.broadcast %cst_60 : f32 to vector<8x32xf32>
    %256 = arith.maximumf %254, %255 : vector<8x32xf32>
    %c0_61 = arith.constant 0 : index
    %c0_62 = arith.constant 0 : index
    %257 = vector.load %arg11[%c0_61, %c0_62] : memref<32x32xf32, #tpu.memory_space<vmem>>, vector<32x32xf32>
    %cst_63 = arith.constant dense<0.000000e+00> : vector<8x32xf32>
    %258 = tpu.matmul %256, %257, %cst_63 {dimension_numbers = #tpu.dot_dimension_numbers<[1], [0], [0], [1], [0, 0, 1, 1], [], []>} : vector<8x32xf32>, vector<32x32xf32>, vector<8x32xf32> -> vector<8x32xf32>
    %c0_64 = arith.constant 0 : index
    %c0_65 = arith.constant 0 : index
    %259 = vector.load %arg12[%c0_64, %c0_65] : memref<1x32xf32, #tpu.memory_space<vmem>>, vector<1x32xf32>
    %260 = vector.broadcast %259 : vector<1x32xf32> to vector<8x32xf32>
    %261 = arith.addf %258, %260 : vector<8x32xf32>
    %cst_66 = arith.constant 0.000000e+00 : f32
    %262 = vector.broadcast %cst_66 : f32 to vector<8x32xf32>
    %263 = arith.maximumf %261, %262 : vector<8x32xf32>
    %c0_67 = arith.constant 0 : index
    %c0_68 = arith.constant 0 : index
    %264 = vector.load %arg13[%c0_67, %c0_68] : memref<32x204xf32, #tpu.memory_space<vmem>>, vector<32x204xf32>
    %cst_69 = arith.constant dense<0.000000e+00> : vector<8x204xf32>
    %265 = tpu.matmul %263, %264, %cst_69 {dimension_numbers = #tpu.dot_dimension_numbers<[1], [0], [0], [1], [0, 0, 1, 1], [], []>} : vector<8x32xf32>, vector<32x204xf32>, vector<8x204xf32> -> vector<8x204xf32>
    %c0_70 = arith.constant 0 : index
    %c0_71 = arith.constant 0 : index
    %266 = vector.load %arg14[%c0_70, %c0_71] : memref<1x204xf32, #tpu.memory_space<vmem>>, vector<1x204xf32>
    %267 = vector.broadcast %266 : vector<1x204xf32> to vector<8x204xf32>
    %268 = arith.addf %265, %267 : vector<8x204xf32>
    %269 = vector.extract_strided_slice %268 {offsets = [0, 0], sizes = [8, 51], strides = [1, 1]} : vector<8x204xf32> to vector<8x51xf32>
    %270 = vector.extract_strided_slice %268 {offsets = [0, 51], sizes = [8, 51], strides = [1, 1]} : vector<8x204xf32> to vector<8x51xf32>
    %271 = vector.extract_strided_slice %268 {offsets = [0, 102], sizes = [8, 51], strides = [1, 1]} : vector<8x204xf32> to vector<8x51xf32>
    %272 = vector.extract_strided_slice %268 {offsets = [0, 153], sizes = [8, 51], strides = [1, 1]} : vector<8x204xf32> to vector<8x51xf32>
    %273 = arith.maximumf %269, %270 : vector<8x51xf32>
    %274 = arith.maximumf %273, %271 : vector<8x51xf32>
    %275 = arith.maximumf %274, %272 : vector<8x51xf32>
    %276 = arith.subf %269, %275 : vector<8x51xf32>
    %277 = math.exp %276 : vector<8x51xf32>
    %278 = arith.subf %270, %275 : vector<8x51xf32>
    %279 = math.exp %278 : vector<8x51xf32>
    %280 = arith.subf %271, %275 : vector<8x51xf32>
    %281 = math.exp %280 : vector<8x51xf32>
    %282 = arith.subf %272, %275 : vector<8x51xf32>
    %283 = math.exp %282 : vector<8x51xf32>
    %284 = arith.addf %277, %279 : vector<8x51xf32>
    %285 = arith.addf %284, %281 : vector<8x51xf32>
    %286 = arith.addf %285, %283 : vector<8x51xf32>
    %287 = tpu.reciprocal %286 {approx = true} : vector<8x51xf32> -> vector<8x51xf32>
    %288 = arith.mulf %277, %287 : vector<8x51xf32>
    %289 = arith.mulf %279, %287 : vector<8x51xf32>
    %290 = arith.mulf %281, %287 : vector<8x51xf32>
    %291 = arith.mulf %283, %287 : vector<8x51xf32>
    %292 = tpu.concatenate %288, %289, %290, %291 in 1 : vector<8x51xf32>, vector<8x51xf32>, vector<8x51xf32>, vector<8x51xf32> -> vector<8x204xf32>
    %c0_72 = arith.constant 0 : index
    %c0_73 = arith.constant 0 : index
    %293 = vector.load %arg15[%c0_72, %c0_73] : memref<8x204xf32, #tpu.memory_space<vmem>>, vector<8x204xf32>
    tpu.vector_store %arg15[%c0_72, %c0_73], %292 {strides = array<i32>} : memref<8x204xf32, #tpu.memory_space<vmem>>, vector<8x204xf32>,
    return
  }
}

</mosaic_0001>

<llo_original>
// kernel: tpu_custom_call.1
$region0: #{tpu_custom_call.1}
  #allocation0 [shape = 'u32[]', space=smem, size = 0x4, offset = 0x4, fixed_abs, tag = 'smem constant byte address 0x4 - core index']
  #allocation1 [shape = 'u32[144,128]{1,0:T(1,128)}', space=vmem, size = 0x12000, scoped, tag = 'internal scratch']
  %s0 = inlined_call_operand.vmem [shape: f32[64,4], index: 0, kind: input, shape index: {}]
  %s1 = inlined_call_operand.vmem [shape: f32[8,2], index: 1, kind: input, shape index: {}]
  %s2 = inlined_call_operand.hbm [shape: f32[4,128], index: 2, kind: input, shape index: {}]
  %s3 = inlined_call_operand.vmem [shape: f32[32,128], index: 3, kind: input, shape index: {}]
  %s4 = inlined_call_operand.hbm [shape: f32[1,128], index: 4, kind: input, shape index: {}]
  %s5 = inlined_call_operand.hbm [shape: f32[2,32], index: 5, kind: input, shape index: {}]
  %s6 = inlined_call_operand.vmem [shape: f32[1,32], index: 6, kind: input, shape index: {}]
  %s7 = inlined_call_operand.vmem [shape: f32[64,32], index: 7, kind: input, shape index: {}]
  %s8 = inlined_call_operand.vmem [shape: f32[1,32], index: 8, kind: input, shape index: {}]
  %s9 = inlined_call_operand.vmem [shape: f32[32,32], index: 9, kind: input, shape index: {}]
  %s10 = inlined_call_operand.vmem [shape: f32[1,32], index: 10, kind: input, shape index: {}]
  %s11 = inlined_call_operand.vmem [shape: f32[32,32], index: 11, kind: input, shape index: {}]
  %s12 = inlined_call_operand.vmem [shape: f32[1,32], index: 12, kind: input, shape index: {}]
  %s13 = inlined_call_operand.vmem [shape: f32[32,204], index: 13, kind: input, shape index: {}]
  %s14 = inlined_call_operand.vmem [shape: f32[1,204], index: 14, kind: input, shape index: {}]
  %s15 = inlined_call_operand.hbm [shape: f32[8,204], index: 15, kind: output, shape index: {}]
  %s16 = sld [smem:[#allocation0]]
  $region82: #{tpu_custom_call.1} parent=0
    _
  %s18 = ssub.s32 1, %s16
  %s19 = scalar_select 0, %s18, %s16
  $region1: #{tpu_custom_call.1} parent=0
    #allocation2 [shape = 'u8[2048]{0}', space=vmem, size = 0x800, scoped, tag = 'input window, operand 2, single buffered']
    #allocation3 [shape = 's32[1]{0}', space=sflag, size = 0x4, scoped, tag = 'scoped memory for tpu_custom_call.1']
    #allocation4 [shape = 's32[1]{0}', space=sflag, size = 0x4, scoped, tag = 'scoped memory for tpu_custom_call.1']
    #allocation5 [shape = 'u8[512]{0}', space=vmem, size = 0x400, scoped, tag = 'input window, operand 4, single buffered']
    #allocation6 [shape = 's32[1]{0}', space=sflag, size = 0x4, scoped, tag = 'scoped memory for tpu_custom_call.1']
    #allocation7 [shape = 'u8[1024]{0}', space=vmem, size = 0x400, scoped, tag = 'input window, operand 5, single buffered']
    #allocation8 [shape = 'u8[8192]{0}', space=vmem, size = 0x2000, scoped, tag = 'output window, operand 0, single buffered']
    %20 = vsyncpa [#allocation3], 0
    %21 = vsyncpa [#allocation6], 0
    %22 = vsyncpa [#allocation4], 0
    // Predicated region
    $region2: #{tpu_custom_call.1} parent=1 // pred_check
      _
    $region3: #{tpu_custom_call.1} parent=1 // pred_check_branch
      %24 = sbr.rel (0) target = $region5
    $region4: #{tpu_custom_call.1} parent=1 // pred_region
      _
    $region5: #{tpu_custom_call.1} parent=1 // pred_fallthru
      _
    // Predicated region
    $region6: #{tpu_custom_call.1} parent=1 // pred_check
      _
    $region7: #{tpu_custom_call.1} parent=1 // pred_check_branch
      %26 = sbr.rel (0) target = $region9
    $region8: #{tpu_custom_call.1} parent=1 // pred_region
      _
    $region9: #{tpu_custom_call.1} parent=1 // pred_fallthru
      _
    // Predicated region
    $region10: #{tpu_custom_call.1} parent=1 // pred_check
      _
    $region11: #{tpu_custom_call.1} parent=1 // pred_check_branch
      %28 = sbr.rel (0) target = $region13
    $region12: #{tpu_custom_call.1} parent=1 // pred_region
      %s30 = ssub.s32 64, 64
      %31 = vsyncadd [#allocation3], %s30
      %s33 = sshll.u32 [#allocation2], 4
      %s34 = int_to_ptr.vmem [resolvable:$true] %s33
      %36 = dma.hbm_to_vmem [thread:$0]  %s2, 64, %s34, [#allocation3]
    $region13: #{tpu_custom_call.1} parent=1 // pred_fallthru
      _
    // Predicated region
    $region14: #{tpu_custom_call.1} parent=1 // pred_check
      _
    $region15: #{tpu_custom_call.1} parent=1 // pred_check_branch
      %38 = sbr.rel (0) target = $region17
    $region16: #{tpu_custom_call.1} parent=1 // pred_region
      _
    $region17: #{tpu_custom_call.1} parent=1 // pred_fallthru
      _
    // Predicated region
    $region18: #{tpu_custom_call.1} parent=1 // pred_check
      _
    $region19: #{tpu_custom_call.1} parent=1 // pred_check_branch
      %40 = sbr.rel (0) target = $region21
    $region20: #{tpu_custom_call.1} parent=1 // pred_region
      %s42 = ssub.s32 16, 16
      %43 = vsyncadd [#allocation6], %s42
      %s45 = sshll.u32 [#allocation5], 4
      %s46 = int_to_ptr.vmem [resolvable:$true] %s45
      %48 = dma.hbm_to_vmem [thread:$0]  %s4, 16, %s46, [#allocation6]
    $region21: #{tpu_custom_call.1} parent=1 // pred_fallthru
      _
    // Predicated region
    $region22: #{tpu_custom_call.1} parent=1 // pred_check
      _
    $region23: #{tpu_custom_call.1} parent=1 // pred_check_branch
      %50 = sbr.rel (0) target = $region25
    $region24: #{tpu_custom_call.1} parent=1 // pred_region
      %s52 = ssub.s32 32, 32
      %53 = vsyncadd [#allocation6], %s52
      %s55 = sshll.u32 [#allocation7], 4
      %s56 = int_to_ptr.vmem [resolvable:$true] %s55
      %58 = dma.hbm_to_vmem [thread:$0]  %s5, 32, %s56, [#allocation6]
    $region25: #{tpu_custom_call.1} parent=1 // pred_fallthru
      _
    // Predicated region
    $region26: #{tpu_custom_call.1} parent=1 // pred_check
      _
    $region27: #{tpu_custom_call.1} parent=1 // pred_check_branch
      %60 = sbr.rel (0) target = $region29
    $region28: #{tpu_custom_call.1} parent=1 // pred_region
      _
    $region29: #{tpu_custom_call.1} parent=1 // pred_fallthru
      _
    // Predicated region
    $region30: #{tpu_custom_call.1} parent=1 // pred_check
      _
    $region31: #{tpu_custom_call.1} parent=1 // pred_check_branch
      %62 = sbr.rel (0) target = $region33
    $region32: #{tpu_custom_call.1} parent=1 // pred_region
      _
    $region33: #{tpu_custom_call.1} parent=1 // pred_fallthru
      _
    // Predicated region
    $region34: #{tpu_custom_call.1} parent=1 // pred_check
      _
    $region35: #{tpu_custom_call.1} parent=1 // pred_check_branch
      %64 = sbr.rel (0) target = $region37
    $region36: #{tpu_custom_call.1} parent=1 // pred_region
      _
    $region37: #{tpu_custom_call.1} parent=1 // pred_fallthru
      _
    // Predicated region
    $region38: #{tpu_custom_call.1} parent=1 // pred_check
      _
    $region39: #{tpu_custom_call.1} parent=1 // pred_check_branch
      %66 = sbr.rel (0) target = $region41
    $region40: #{tpu_custom_call.1} parent=1 // pred_region
      _
    $region41: #{tpu_custom_call.1} parent=1 // pred_fallthru
      _
    // Predicated region
    $region42: #{tpu_custom_call.1} parent=1 // pred_check
      _
    $region43: #{tpu_custom_call.1} parent=1 // pred_check_branch
      %68 = sbr.rel (0) target = $region45
    $region44: #{tpu_custom_call.1} parent=1 // pred_region
      _
    $region45: #{tpu_custom_call.1} parent=1 // pred_fallthru
      _
    // Predicated region
    $region46: #{tpu_custom_call.1} parent=1 // pred_check
      _
    $region47: #{tpu_custom_call.1} parent=1 // pred_check_branch
      %70 = sbr.rel (0) target = $region49
    $region48: #{tpu_custom_call.1} parent=1 // pred_region
      _
    $region49: #{tpu_custom_call.1} parent=1 // pred_fallthru
      _
    // Predicated region
    $region50: #{tpu_custom_call.1} parent=1 // pred_check
      _
    $region51: #{tpu_custom_call.1} parent=1 // pred_check_branch
      %72 = sbr.rel (0) target = $region53
    $region52: #{tpu_custom_call.1} parent=1 // pred_region
      _
    $region53: #{tpu_custom_call.1} parent=1 // pred_fallthru
      _
    // Predicated region
    $region54: #{tpu_custom_call.1} parent=1 // pred_check
      _
    $region55: #{tpu_custom_call.1} parent=1 // pred_check_branch
      %74 = sbr.rel (0) target = $region57
    $region56: #{tpu_custom_call.1} parent=1 // pred_region
      _
    $region57: #{tpu_custom_call.1} parent=1 // pred_fallthru
      _
    // Predicated region
    $region58: #{tpu_custom_call.1} parent=1 // pred_check
      _
    $region59: #{tpu_custom_call.1} parent=1 // pred_check_branch
      %76 = sbr.rel (0) target = $region61
    $region60: #{tpu_custom_call.1} parent=1 // pred_region
      _
    $region61: #{tpu_custom_call.1} parent=1 // pred_fallthru
      _
    // Predicated region
    $region62: #{tpu_custom_call.1} parent=1 // pred_check
      _
    $region63: #{tpu_custom_call.1} parent=1 // pred_check_branch
      %78 = sbr.rel (0) target = $region65
    $region64: #{tpu_custom_call.1} parent=1 // pred_region
      %79 = dma.done [#allocation3], 64
    $region65: #{tpu_custom_call.1} parent=1 // pred_fallthru
      _
    // Predicated region
    $region66: #{tpu_custom_call.1} parent=1 // pred_check
      _
    $region67: #{tpu_custom_call.1} parent=1 // pred_check_branch
      %81 = sbr.rel (0) target = $region69
    $region68: #{tpu_custom_call.1} parent=1 // pred_region
      %82 = dma.done [#allocation6], 16
    $region69: #{tpu_custom_call.1} parent=1 // pred_fallthru
      _
    // Predicated region
    $region70: #{tpu_custom_call.1} parent=1 // pred_check
      _
    $region71: #{tpu_custom_call.1} parent=1 // pred_check_branch
      %84 = sbr.rel (0) target = $region73
    $region72: #{tpu_custom_call.1} parent=1 // pred_region
      %85 = dma.done [#allocation6], 32
    $region73: #{tpu_custom_call.1} parent=1 // pred_fallthru
      _
    %v86 = vld [vmem:[%s0] sm:$0xff]
    %v87 = vld [vmem:[%s0 + $0x8] sm:$0xff]
    %v88 = vld [vmem:[%s0 + $0x10] sm:$0xff]
    %v89 = vld [vmem:[%s0 + $0x18] sm:$0xff]
    %v90 = vld [vmem:[%s0 + $0x20] sm:$0xff]
    %v91 = vld [vmem:[%s0 + $0x28] sm:$0xff]
    %v92 = vld [vmem:[%s0 + $0x30] sm:$0xff]
    %v93 = vld [vmem:[%s0 + $0x38] sm:$0xff]
    %v94 = vld [vmem:[#allocation2] sm:$0xf]
    %v95 = vld [vmem:[#allocation5] sm:$0x1]
    %v97 = vlaneseq
    %v98 = vshrl.u32 %v97, 7
    %v99 = vsub.s32 0, %v98
    %v100 = vrot.slane %v95, %v99
    %vm102 = vcmask 31744
    %v104 = vsel %vm102, %v86, 0
    %v107 = vsel %vm102, %v87, 0
    %v110 = vsel %vm102, %v88, 0
    %v113 = vsel %vm102, %v89, 0
    %v116 = vsel %vm102, %v90, 0
    %v119 = vsel %vm102, %v91, 0
    %v122 = vsel %vm102, %v92, 0
    %v125 = vsel %vm102, %v93, 0
    %vm127 = vcmask 1043456
    %v129 = vsel %vm127, %v94, 0
    %131 = vmatprep.subr.mxu0 0.0
    %132 = vmatpush1.msra.mxu0 %v129
    %133 = vmatprep.subr.mxu0 0.0
    %134 = vmatpush1.msra.mxu0 0.0
    %135 = vmatprep.subr.mxu0 0.0
    %136 = vmatpush1.msra.mxu0 0.0
    %137 = vmatprep.subr.mxu0 0.0
    %138 = vmatpush1.msra.mxu0 0.0
    %139 = vmatprep.subr.mxu0 0.0
    %140 = vmatpush1.msra.mxu0 0.0
    %141 = vmatprep.subr.mxu0 0.0
    %142 = vmatpush1.msra.mxu0 0.0
    %143 = vmatprep.subr.mxu0 0.0
    %144 = vmatpush1.msra.mxu0 0.0
    %145 = vmatprep.subr.mxu0 0.0
    %146 = vmatpush1.msra.mxu0 0.0
    %147 = vmatprep.subr.mxu0 0.0
    %148 = vmatpush1.msra.mxu0 0.0
    %149 = vmatprep.subr.mxu0 0.0
    %150 = vmatpush1.msra.mxu0 0.0
    %151 = vmatprep.subr.mxu0 0.0
    %152 = vmatpush1.msra.mxu0 0.0
    %153 = vmatprep.subr.mxu0 0.0
    %154 = vmatpush1.msra.mxu0 0.0
    %155 = vmatprep.subr.mxu0 0.0
    %156 = vmatpush1.msra.mxu0 0.0
    %157 = vmatprep.subr.mxu0 0.0
    %158 = vmatpush1.msra.mxu0 0.0
    %159 = vmatprep.subr.mxu0 0.0
    %160 = vmatpush1.msra.mxu0 0.0
    %161 = vmatprep.subr.mxu0 0.0
    %162 = vmatpush1.msra.mxu0 0.0
    %163 = vmatprep.subr.mxu0 0.0
    %164 = vmatpush1.msra.mxu0 0.0
    %165 = vmatprep.subr.mxu0 0.0
    %166 = vmatpush1.msra.mxu0 0.0
    %167 = vmatprep.subr.mxu0 0.0
    %168 = vmatpush1.msra.mxu0 0.0
    %169 = vmatprep.subr.mxu0 0.0
    %170 = vmatpush1.msra.mxu0 0.0
    %171 = vmatprep.subr.mxu0 0.0
    %172 = vmatpush1.msra.mxu0 0.0
    %173 = vmatprep.subr.mxu0 0.0
    %174 = vmatpush1.msra.mxu0 0.0
    %175 = vmatprep.subr.mxu0 0.0
    %176 = vmatpush1.msra.mxu0 0.0
    %177 = vmatprep.subr.mxu0 0.0
    %178 = vmatpush1.msra.mxu0 0.0
    %179 = vmatprep.subr.mxu0 0.0
    %180 = vmatpush1.msra.mxu0 0.0
    %181 = vmatprep.subr.mxu0 0.0
    %182 = vmatpush1.msra.mxu0 0.0
    %183 = vmatprep.subr.mxu0 0.0
    %184 = vmatpush1.msra.mxu0 0.0
    %185 = vmatprep.subr.mxu0 0.0
    %186 = vmatpush1.msra.mxu0 0.0
    %187 = vmatprep.subr.mxu0 0.0
    %188 = vmatpush1.msra.mxu0 0.0
    %189 = vmatprep.subr.mxu0 0.0
    %190 = vmatpush1.msra.mxu0 0.0
    %191 = vmatprep.subr.mxu0 0.0
    %192 = vmatpush1.msra.mxu0 0.0
    %193 = vmatprep.subr.mxu0 0.0
    %194 = vmatpush1.msra.mxu0 0.0
    %195 = vmatprep.mubr.f32.mxu0 0.0
    %196 = vmatmul.mubr.f32.gmra.mrb[0].mxu0 %v104
    %v197 = vpop.f32.mrb[0].mxu0
    %v198 = vadd.f32 %v100, %v197
    %v199 = vpop.f32.mrb[0].mxu0
    %200 = vmatprep.mubr.f32.mxu0 0.0
    %201 = vmatmul.mubr.f32.gmra.mrb[0].mxu0 %v107
    %v202 = vpop.f32.mrb[0].mxu0
    %v203 = vadd.f32 %v100, %v202
    %v204 = vpop.f32.mrb[0].mxu0
    %205 = vmatprep.mubr.f32.mxu0 0.0
    %206 = vmatmul.mubr.f32.gmra.mrb[0].mxu0 %v110
    %v207 = vpop.f32.mrb[0].mxu0
    %v208 = vadd.f32 %v100, %v207
    %v209 = vpop.f32.mrb[0].mxu0
    %210 = vmatprep.mubr.f32.mxu0 0.0
    %211 = vmatmul.mubr.f32.gmra.mrb[0].mxu0 %v113
    %v212 = vpop.f32.mrb[0].mxu0
    %v213 = vadd.f32 %v100, %v212
    %v214 = vpop.f32.mrb[0].mxu0
    %215 = vmatprep.mubr.f32.mxu0 0.0
    %216 = vmatmul.mubr.f32.gmra.mrb[0].mxu0 %v116
    %v217 = vpop.f32.mrb[0].mxu0
    %v218 = vadd.f32 %v100, %v217
    %v219 = vpop.f32.mrb[0].mxu0
    %220 = vmatprep.mubr.f32.mxu0 0.0
    %221 = vmatmul.mubr.f32.gmra.mrb[0].mxu0 %v119
    %v222 = vpop.f32.mrb[0].mxu0
    %v223 = vadd.f32 %v100, %v222
    %v224 = vpop.f32.mrb[0].mxu0
    %225 = vmatprep.mubr.f32.mxu0 0.0
    %226 = vmatmul.mubr.f32.gmra.mrb[0].mxu0 %v122
    %v227 = vpop.f32.mrb[0].mxu0
    %v228 = vadd.f32 %v100, %v227
    %v229 = vpop.f32.mrb[0].mxu0
    %230 = vmatprep.mubr.f32.mxu0 0.0
    %231 = vmatmul.mubr.f32.gmra.mrb[0].mxu0 %v125
    %v232 = vpop.f32.mrb[0].mxu0
    %v233 = vadd.f32 %v100, %v232
    %v234 = vpop.f32.mrb[0].mxu0
    %235 = vdwg.mxu0
    %v236 = vld [vmem:[%s3] sm:$0xff]
    %v237 = vld [vmem:[%s3 + $0x8] sm:$0xff]
    %v238 = vld [vmem:[%s3 + $0x10] sm:$0xff]
    %v239 = vld [vmem:[%s3 + $0x18] sm:$0xff]
    %vm240 = vcmask 261120
    %v242 = vsel %vm240, 0.0, 0
    %244 = vmatprep.subr.mxu0 0.0
    %245 = vmatpush1.msra.mxu0 %v236
    %246 = vmatprep.subr.mxu0 0.0
    %247 = vmatpush1.msra.mxu0 %v237
    %248 = vmatprep.subr.mxu0 0.0
    %249 = vmatpush1.msra.mxu0 %v238
    %250 = vmatprep.subr.mxu0 0.0
    %251 = vmatpush1.msra.mxu0 %v239
    %252 = vmatprep.subr.mxu0 0.0
    %253 = vmatpush1.msra.mxu0 0.0
    %254 = vmatprep.subr.mxu0 0.0
    %255 = vmatpush1.msra.mxu0 0.0
    %256 = vmatprep.subr.mxu0 0.0
    %257 = vmatpush1.msra.mxu0 0.0
    %258 = vmatprep.subr.mxu0 0.0
    %259 = vmatpush1.msra.mxu0 0.0
    %260 = vmatprep.subr.mxu0 0.0
    %261 = vmatpush1.msra.mxu0 0.0
    %262 = vmatprep.subr.mxu0 0.0
    %263 = vmatpush1.msra.mxu0 0.0
    %264 = vmatprep.subr.mxu0 0.0
    %265 = vmatpush1.msra.mxu0 0.0
    %266 = vmatprep.subr.mxu0 0.0
    %267 = vmatpush1.msra.mxu0 0.0
    %268 = vmatprep.subr.mxu0 0.0
    %269 = vmatpush1.msra.mxu0 0.0
    %270 = vmatprep.subr.mxu0 0.0
    %271 = vmatpush1.msra.mxu0 0.0
    %272 = vmatprep.subr.mxu0 0.0
    %273 = vmatpush1.msra.mxu0 0.0
    %274 = vmatprep.subr.mxu0 0.0
    %275 = vmatpush1.msra.mxu0 0.0
    %276 = vmatprep.subr.mxu0 0.0
    %277 = vmatpush1.msra.mxu0 0.0
    %278 = vmatprep.subr.mxu0 0.0
    %279 = vmatpush1.msra.mxu0 0.0
    %280 = vmatprep.subr.mxu0 0.0
    %281 = vmatpush1.msra.mxu0 0.0
    %282 = vmatprep.subr.mxu0 0.0
    %283 = vmatpush1.msra.mxu0 0.0
    %284 = vmatprep.subr.mxu0 0.0
    %285 = vmatpush1.msra.mxu0 0.0
    %286 = vmatprep.subr.mxu0 0.0
    %287 = vmatpush1.msra.mxu0 0.0
    %288 = vmatprep.subr.mxu0 0.0
    %289 = vmatpush1.msra.mxu0 0.0
    %290 = vmatprep.subr.mxu0 0.0
    %291 = vmatpush1.msra.mxu0 0.0
    %292 = vmatprep.subr.mxu0 0.0
    %293 = vmatpush1.msra.mxu0 0.0
    %294 = vmatprep.subr.mxu0 0.0
    %295 = vmatpush1.msra.mxu0 0.0
    %296 = vmatprep.subr.mxu0 0.0
    %297 = vmatpush1.msra.mxu0 0.0
    %298 = vmatprep.subr.mxu0 0.0
    %299 = vmatpush1.msra.mxu0 0.0
    %300 = vmatprep.subr.mxu0 0.0
    %301 = vmatpush1.msra.mxu0 0.0
    %302 = vmatprep.subr.mxu0 0.0
    %303 = vmatpush1.msra.mxu0 0.0
    %304 = vmatprep.subr.mxu0 0.0
    %305 = vmatpush1.msra.mxu0 0.0
    %306 = vmatprep.subr.mxu0 0.0
    %307 = vmatpush1.msra.mxu0 0.0
    %308 = vmatprep.mubr.f32.mxu0 0.0
    %309 = vmatmul.mubr.f32.gmra.mrb[0].mxu0 %v242
    %v310 = vpop.f32.mrb[0].mxu0
    %v311 = vadd.f32 0.0, %v310
    %v312 = vpop.f32.mrb[0].mxu0
    %313 = vdwg.mxu0
    %v314 = vadd.f32 %v198, %v311
    %v315 = vxor.u32 %v314, 2147483648
    %v316 = vmul.f32 %v315, 1.442695
    %v317 = vpow.pop %v316
    %v318 = vadd.f32 %v317, 1.0
    %v319 = vrcp.pop %v318
    %v320 = vmul.f32 1.0, %v319
    %v321 = vtanh.pop %v314
    %v322 = vmul.f32 %v320, 0.0
    %324 = vrot.lane.b32.xlu0 %v321, 64
    %v325 = vpop.permute.xlu0 %324
    %v327 = vmul.f32 %v320, %v325
    %329 = vrot.lane.b32.xlu0 %v327, 32
    %v330 = vpop.permute.xlu0 %329
    %v332 = vadd.f32 %v322, %v330
    %v333 = vtanh.pop %v332
    %335 = vrot.lane.b32.xlu0 %v333, 64
    %v336 = vpop.permute.xlu0 %335
    %v338 = vmul.f32 %v320, %v336
    %340 = vrot.lane.b32.xlu0 %v338, 32
    %v341 = vpop.permute.xlu0 %340
    %v342 = vsel %vm240, %v341, 0
    %344 = vmatprep.subr.mxu0 0.0
    %345 = vmatpush1.msra.mxu0 %v236
    %346 = vmatprep.subr.mxu0 0.0
    %347 = vmatpush1.msra.mxu0 %v237
    %348 = vmatprep.subr.mxu0 0.0
    %349 = vmatpush1.msra.mxu0 %v238
    %350 = vmatprep.subr.mxu0 0.0
    %351 = vmatpush1.msra.mxu0 %v239
    %352 = vmatprep.subr.mxu0 0.0
    %353 = vmatpush1.msra.mxu0 0.0
    %354 = vmatprep.subr.mxu0 0.0
    %355 = vmatpush1.msra.mxu0 0.0
    %356 = vmatprep.subr.mxu0 0.0
    %357 = vmatpush1.msra.mxu0 0.0
    %358 = vmatprep.subr.mxu0 0.0
    %359 = vmatpush1.msra.mxu0 0.0
    %360 = vmatprep.subr.mxu0 0.0
    %361 = vmatpush1.msra.mxu0 0.0
    %362 = vmatprep.subr.mxu0 0.0
    %363 = vmatpush1.msra.mxu0 0.0
    %364 = vmatprep.subr.mxu0 0.0
    %365 = vmatpush1.msra.mxu0 0.0
    %366 = vmatprep.subr.mxu0 0.0
    %367 = vmatpush1.msra.mxu0 0.0
    %368 = vmatprep.subr.mxu0 0.0
    %369 = vmatpush1.msra.mxu0 0.0
    %370 = vmatprep.subr.mxu0 0.0
    %371 = vmatpush1.msra.mxu0 0.0
    %372 = vmatprep.subr.mxu0 0.0
    %373 = vmatpush1.msra.mxu0 0.0
    %374 = vmatprep.subr.mxu0 0.0
    %375 = vmatpush1.msra.mxu0 0.0
    %376 = vmatprep.subr.mxu0 0.0
    %377 = vmatpush1.msra.mxu0 0.0
    %378 = vmatprep.subr.mxu0 0.0
    %379 = vmatpush1.msra.mxu0 0.0
    %380 = vmatprep.subr.mxu0 0.0
    %381 = vmatpush1.msra.mxu0 0.0
    %382 = vmatprep.subr.mxu0 0.0
    %383 = vmatpush1.msra.mxu0 0.0
    %384 = vmatprep.subr.mxu0 0.0
    %385 = vmatpush1.msra.mxu0 0.0
    %386 = vmatprep.subr.mxu0 0.0
    %387 = vmatpush1.msra.mxu0 0.0
    %388 = vmatprep.subr.mxu0 0.0
    %389 = vmatpush1.msra.mxu0 0.0
    %390 = vmatprep.subr.mxu0 0.0
    %391 = vmatpush1.msra.mxu0 0.0
    %392 = vmatprep.subr.mxu0 0.0
    %393 = vmatpush1.msra.mxu0 0.0
    %394 = vmatprep.subr.mxu0 0.0
    %395 = vmatpush1.msra.mxu0 0.0
    %396 = vmatprep.subr.mxu0 0.0
    %397 = vmatpush1.msra.mxu0 0.0
    %398 = vmatprep.subr.mxu0 0.0
    %399 = vmatpush1.msra.mxu0 0.0
    %400 = vmatprep.subr.mxu0 0.0
    %401 = vmatpush1.msra.mxu0 0.0
    %402 = vmatprep.subr.mxu0 0.0
    %403 = vmatpush1.msra.mxu0 0.0
    %404 = vmatprep.subr.mxu0 0.0
    %405 = vmatpush1.msra.mxu0 0.0
    %406 = vmatprep.subr.mxu0 0.0
    %407 = vmatpush1.msra.mxu0 0.0
    %408 = vmatprep.mubr.f32.mxu0 0.0
    %409 = vmatmul.mubr.f32.gmra.mrb[0].mxu0 %v342
    %v410 = vpop.f32.mrb[0].mxu0
    %v411 = vadd.f32 0.0, %v410
    %v412 = vpop.f32.mrb[0].mxu0
    %413 = vdwg.mxu0
    %v414 = vadd.f32 %v203, %v411
    %v415 = vxor.u32 %v414, 2147483648
    %v416 = vmul.f32 %v415, 1.442695
    %v417 = vpow.pop %v416
    %v418 = vadd.f32 %v417, 1.0
    %v419 = vrcp.pop %v418
    %v420 = vmul.f32 1.0, %v419
    %v421 = vtanh.pop %v414
    %v422 = vmul.f32 %v420, %v332
    %424 = vrot.lane.b32.xlu0 %v421, 64
    %v425 = vpop.permute.xlu0 %424
    %v427 = vmul.f32 %v420, %v425
    %429 = vrot.lane.b32.xlu0 %v427, 32
    %v430 = vpop.permute.xlu0 %429
    %v432 = vadd.f32 %v422, %v430
    %v433 = vtanh.pop %v432
    %435 = vrot.lane.b32.xlu0 %v433, 64
    %v436 = vpop.permute.xlu0 %435
    %v438 = vmul.f32 %v420, %v436
    %440 = vrot.lane.b32.xlu0 %v438, 32
    %v441 = vpop.permute.xlu0 %440
    %v442 = vsel %vm240, %v441, 0
    %444 = vmatprep.subr.mxu0 0.0
    %445 = vmatpush1.msra.mxu0 %v236
    %446 = vmatprep.subr.mxu0 0.0
    %447 = vmatpush1.msra.mxu0 %v237
    %448 = vmatprep.subr.mxu0 0.0
    %449 = vmatpush1.msra.mxu0 %v238
    %450 = vmatprep.subr.mxu0 0.0
    %451 = vmatpush1.msra.mxu0 %v239
    %452 = vmatprep.subr.mxu0 0.0
    %453 = vmatpush1.msra.mxu0 0.0
    %454 = vmatprep.subr.mxu0 0.0
    %455 = vmatpush1.msra.mxu0 0.0
    %456 = vmatprep.subr.mxu0 0.0
    %457 = vmatpush1.msra.mxu0 0.0
    %458 = vmatprep.subr.mxu0 0.0
    %459 = vmatpush1.msra.mxu0 0.0
    %460 = vmatprep.subr.mxu0 0.0
    %461 = vmatpush1.msra.mxu0 0.0
    %462 = vmatprep.subr.mxu0 0.0
    %463 = vmatpush1.msra.mxu0 0.0
    %464 = vmatprep.subr.mxu0 0.0
    %465 = vmatpush1.msra.mxu0 0.0
    %466 = vmatprep.subr.mxu0 0.0
    %467 = vmatpush1.msra.mxu0 0.0
    %468 = vmatprep.subr.mxu0 0.0
    %469 = vmatpush1.msra.mxu0 0.0
    %470 = vmatprep.subr.mxu0 0.0
    %471 = vmatpush1.msra.mxu0 0.0
    %472 = vmatprep.subr.mxu0 0.0
    %473 = vmatpush1.msra.mxu0 0.0
    %474 = vmatprep.subr.mxu0 0.0
    %475 = vmatpush1.msra.mxu0 0.0
    %476 = vmatprep.subr.mxu0 0.0
    %477 = vmatpush1.msra.mxu0 0.0
    %478 = vmatprep.subr.mxu0 0.0
    %479 = vmatpush1.msra.mxu0 0.0
    %480 = vmatprep.subr.mxu0 0.0
    %481 = vmatpush1.msra.mxu0 0.0
    %482 = vmatprep.subr.mxu0 0.0
    %483 = vmatpush1.msra.mxu0 0.0
    %484 = vmatprep.subr.mxu0 0.0
    %485 = vmatpush1.msra.mxu0 0.0
    %486 = vmatprep.subr.mxu0 0.0
    %487 = vmatpush1.msra.mxu0 0.0
    %488 = vmatprep.subr.mxu0 0.0
    %489 = vmatpush1.msra.mxu0 0.0
    %490 = vmatprep.subr.mxu0 0.0
    %491 = vmatpush1.msra.mxu0 0.0
    %492 = vmatprep.subr.mxu0 0.0
    %493 = vmatpush1.msra.mxu0 0.0
    %494 = vmatprep.subr.mxu0 0.0
    %495 = vmatpush1.msra.mxu0 0.0
    %496 = vmatprep.subr.mxu0 0.0
    %497 = vmatpush1.msra.mxu0 0.0
    %498 = vmatprep.subr.mxu0 0.0
    %499 = vmatpush1.msra.mxu0 0.0
    %500 = vmatprep.subr.mxu0 0.0
    %501 = vmatpush1.msra.mxu0 0.0
    %502 = vmatprep.subr.mxu0 0.0
    %503 = vmatpush1.msra.mxu0 0.0
    %504 = vmatprep.subr.mxu0 0.0
    %505 = vmatpush1.msra.mxu0 0.0
    %506 = vmatprep.subr.mxu0 0.0
    %507 = vmatpush1.msra.mxu0 0.0
    %508 = vmatprep.mubr.f32.mxu0 0.0
    %509 = vmatmul.mubr.f32.gmra.mrb[0].mxu0 %v442
    %v510 = vpop.f32.mrb[0].mxu0
    %v511 = vadd.f32 0.0, %v510
    %v512 = vpop.f32.mrb[0].mxu0
    %513 = vdwg.mxu0
    %v514 = vadd.f32 %v208, %v511
    %v515 = vxor.u32 %v514, 2147483648
    %v516 = vmul.f32 %v515, 1.442695
    %v517 = vpow.pop %v516
    %v518 = vadd.f32 %v517, 1.0
    %v519 = vrcp.pop %v518
    %v520 = vmul.f32 1.0, %v519
    %v521 = vtanh.pop %v514
    %v522 = vmul.f32 %v520, %v432
    %524 = vrot.lane.b32.xlu0 %v521, 64
    %v525 = vpop.permute.xlu0 %524
    %v527 = vmul.f32 %v520, %v525
    %529 = vrot.lane.b32.xlu0 %v527, 32
    %v530 = vpop.permute.xlu0 %529
    %v532 = vadd.f32 %v522, %v530
    %v533 = vtanh.pop %v532
    %535 = vrot.lane.b32.xlu0 %v533, 64
    %v536 = vpop.permute.xlu0 %535
    %v538 = vmul.f32 %v520, %v536
    %540 = vrot.lane.b32.xlu0 %v538, 32
    %v541 = vpop.permute.xlu0 %540
    %v542 = vsel %vm240, %v541, 0
    %544 = vmatprep.subr.mxu0 0.0
    %545 = vmatpush1.msra.mxu0 %v236
    %546 = vmatprep.subr.mxu0 0.0
    %547 = vmatpush1.msra.mxu0 %v237
    %548 = vmatprep.subr.mxu0 0.0
    %549 = vmatpush1.msra.mxu0 %v238
    %550 = vmatprep.subr.mxu0 0.0
    %551 = vmatpush1.msra.mxu0 %v239
    %552 = vmatprep.subr.mxu0 0.0
    %553 = vmatpush1.msra.mxu0 0.0
    %554 = vmatprep.subr.mxu0 0.0
    %555 = vmatpush1.msra.mxu0 0.0
    %556 = vmatprep.subr.mxu0 0.0
    %557 = vmatpush1.msra.mxu0 0.0
    %558 = vmatprep.subr.mxu0 0.0
    %559 = vmatpush1.msra.mxu0 0.0
    %560 = vmatprep.subr.mxu0 0.0
    %561 = vmatpush1.msra.mxu0 0.0
    %562 = vmatprep.subr.mxu0 0.0
    %563 = vmatpush1.msra.mxu0 0.0
    %564 = vmatprep.subr.mxu0 0.0
    %565 = vmatpush1.msra.mxu0 0.0
    %566 = vmatprep.subr.mxu0 0.0
    %567 = vmatpush1.msra.mxu0 0.0
    %568 = vmatprep.subr.mxu0 0.0
    %569 = vmatpush1.msra.mxu0 0.0
    %570 = vmatprep.subr.mxu0 0.0
    %571 = vmatpush1.msra.mxu0 0.0
    %572 = vmatprep.subr.mxu0 0.0
    %573 = vmatpush1.msra.mxu0 0.0
    %574 = vmatprep.subr.mxu0 0.0
    %575 = vmatpush1.msra.mxu0 0.0
    %576 = vmatprep.subr.mxu0 0.0
    %577 = vmatpush1.msra.mxu0 0.0
    %578 = vmatprep.subr.mxu0 0.0
    %579 = vmatpush1.msra.mxu0 0.0
    %580 = vmatprep.subr.mxu0 0.0
    %581 = vmatpush1.msra.mxu0 0.0
    %582 = vmatprep.subr.mxu0 0.0
    %583 = vmatpush1.msra.mxu0 0.0
    %584 = vmatprep.subr.mxu0 0.0
    %585 = vmatpush1.msra.mxu0 0.0
    %586 = vmatprep.subr.mxu0 0.0
    %587 = vmatpush1.msra.mxu0 0.0
    %588 = vmatprep.subr.mxu0 0.0
    %589 = vmatpush1.msra.mxu0 0.0
    %590 = vmatprep.subr.mxu0 0.0
    %591 = vmatpush1.msra.mxu0 0.0
    %592 = vmatprep.subr.mxu0 0.0
    %593 = vmatpush1.msra.mxu0 0.0
    %594 = vmatprep.subr.mxu0 0.0
    %595 = vmatpush1.msra.mxu0 0.0
    %596 = vmatprep.subr.mxu0 0.0
    %597 = vmatpush1.msra.mxu0 0.0
    %598 = vmatprep.subr.mxu0 0.0
    %599 = vmatpush1.msra.mxu0 0.0
    %600 = vmatprep.subr.mxu0 0.0
    %601 = vmatpush1.msra.mxu0 0.0
    %602 = vmatprep.subr.mxu0 0.0
    %603 = vmatpush1.msra.mxu0 0.0
    %604 = vmatprep.subr.mxu0 0.0
    %605 = vmatpush1.msra.mxu0 0.0
    %606 = vmatprep.subr.mxu0 0.0
    %607 = vmatpush1.msra.mxu0 0.0
    %608 = vmatprep.mubr.f32.mxu0 0.0
    %609 = vmatmul.mubr.f32.gmra.mrb[0].mxu0 %v542
    %v610 = vpop.f32.mrb[0].mxu0
    %v611 = vadd.f32 0.0, %v610
    %v612 = vpop.f32.mrb[0].mxu0
    %613 = vdwg.mxu0
    %v614 = vadd.f32 %v213, %v611
    %v615 = vxor.u32 %v614, 2147483648
    %v616 = vmul.f32 %v615, 1.442695
    %v617 = vpow.pop %v616
    %v618 = vadd.f32 %v617, 1.0
    %v619 = vrcp.pop %v618
    %v620 = vmul.f32 1.0, %v619
    %v621 = vtanh.pop %v614
    %v622 = vmul.f32 %v620, %v532
    %624 = vrot.lane.b32.xlu0 %v621, 64
    %v625 = vpop.permute.xlu0 %624
    %v627 = vmul.f32 %v620, %v625
    %629 = vrot.lane.b32.xlu0 %v627, 32
    %v630 = vpop.permute.xlu0 %629
    %v632 = vadd.f32 %v622, %v630
    %v633 = vtanh.pop %v632
    %635 = vrot.lane.b32.xlu0 %v633, 64
    %v636 = vpop.permute.xlu0 %635
    %v638 = vmul.f32 %v620, %v636
    %640 = vrot.lane.b32.xlu0 %v638, 32
    %v641 = vpop.permute.xlu0 %640
    %v642 = vsel %vm240, %v641, 0
    %644 = vmatprep.subr.mxu0 0.0
    %645 = vmatpush1.msra.mxu0 %v236
    %646 = vmatprep.subr.mxu0 0.0
    %647 = vmatpush1.msra.mxu0 %v237
    %648 = vmatprep.subr.mxu0 0.0
    %649 = vmatpush1.msra.mxu0 %v238
    %650 = vmatprep.subr.mxu0 0.0
    %651 = vmatpush1.msra.mxu0 %v239
    %652 = vmatprep.subr.mxu0 0.0
    %653 = vmatpush1.msra.mxu0 0.0
    %654 = vmatprep.subr.mxu0 0.0
    %655 = vmatpush1.msra.mxu0 0.0
    %656 = vmatprep.subr.mxu0 0.0
    %657 = vmatpush1.msra.mxu0 0.0
    %658 = vmatprep.subr.mxu0 0.0
    %659 = vmatpush1.msra.mxu0 0.0
    %660 = vmatprep.subr.mxu0 0.0
    %661 = vmatpush1.msra.mxu0 0.0
    %662 = vmatprep.subr.mxu0 0.0
    %663 = vmatpush1.msra.mxu0 0.0
    %664 = vmatprep.subr.mxu0 0.0
    %665 = vmatpush1.msra.mxu0 0.0
    %666 = vmatprep.subr.mxu0 0.0
    %667 = vmatpush1.msra.mxu0 0.0
    %668 = vmatprep.subr.mxu0 0.0
    %669 = vmatpush1.msra.mxu0 0.0
    %670 = vmatprep.subr.mxu0 0.0
    %671 = vmatpush1.msra.mxu0 0.0
    %672 = vmatprep.subr.mxu0 0.0
    %673 = vmatpush1.msra.mxu0 0.0
    %674 = vmatprep.subr.mxu0 0.0
    %675 = vmatpush1.msra.mxu0 0.0
    %676 = vmatprep.subr.mxu0 0.0
    %677 = vmatpush1.msra.mxu0 0.0
    %678 = vmatprep.subr.mxu0 0.0
    %679 = vmatpush1.msra.mxu0 0.0
    %680 = vmatprep.subr.mxu0 0.0
    %681 = vmatpush1.msra.mxu0 0.0
    %682 = vmatprep.subr.mxu0 0.0
    %683 = vmatpush1.msra.mxu0 0.0
    %684 = vmatprep.subr.mxu0 0.0
    %685 = vmatpush1.msra.mxu0 0.0
    %686 = vmatprep.subr.mxu0 0.0
    %687 = vmatpush1.msra.mxu0 0.0
    %688 = vmatprep.subr.mxu0 0.0
    %689 = vmatpush1.msra.mxu0 0.0
    %690 = vmatprep.subr.mxu0 0.0
    %691 = vmatpush1.msra.mxu0 0.0
    %692 = vmatprep.subr.mxu0 0.0
    %693 = vmatpush1.msra.mxu0 0.0
    %694 = vmatprep.subr.mxu0 0.0
    %695 = vmatpush1.msra.mxu0 0.0
    %696 = vmatprep.subr.mxu0 0.0
    %697 = vmatpush1.msra.mxu0 0.0
    %698 = vmatprep.subr.mxu0 0.0
    %699 = vmatpush1.msra.mxu0 0.0
    %700 = vmatprep.subr.mxu0 0.0
    %701 = vmatpush1.msra.mxu0 0.0
    %702 = vmatprep.subr.mxu0 0.0
    %703 = vmatpush1.msra.mxu0 0.0
    %704 = vmatprep.subr.mxu0 0.0
    %705 = vmatpush1.msra.mxu0 0.0
    %706 = vmatprep.subr.mxu0 0.0
    %707 = vmatpush1.msra.mxu0 0.0
    %708 = vmatprep.mubr.f32.mxu0 0.0
    %709 = vmatmul.mubr.f32.gmra.mrb[0].mxu0 %v642
    %v710 = vpop.f32.mrb[0].mxu0
    %v711 = vadd.f32 0.0, %v710
    %v712 = vpop.f32.mrb[0].mxu0
    %713 = vdwg.mxu0
    %v714 = vadd.f32 %v218, %v711
    %v715 = vxor.u32 %v714, 2147483648
    %v716 = vmul.f32 %v715, 1.442695
    %v717 = vpow.pop %v716
    %v718 = vadd.f32 %v717, 1.0
    %v719 = vrcp.pop %v718
    %v720 = vmul.f32 1.0, %v719
    %v721 = vtanh.pop %v714
    %v722 = vmul.f32 %v720, %v632
    %724 = vrot.lane.b32.xlu0 %v721, 64
    %v725 = vpop.permute.xlu0 %724
    %v727 = vmul.f32 %v720, %v725
    %729 = vrot.lane.b32.xlu0 %v727, 32
    %v730 = vpop.permute.xlu0 %729
    %v732 = vadd.f32 %v722, %v730
    %v733 = vtanh.pop %v732
    %735 = vrot.lane.b32.xlu0 %v733, 64
    %v736 = vpop.permute.xlu0 %735
    %v738 = vmul.f32 %v720, %v736
    %740 = vrot.lane.b32.xlu0 %v738, 32
    %v741 = vpop.permute.xlu0 %740
    %v742 = vsel %vm240, %v741, 0
    %744 = vmatprep.subr.mxu0 0.0
    %745 = vmatpush1.msra.mxu0 %v236
    %746 = vmatprep.subr.mxu0 0.0
    %747 = vmatpush1.msra.mxu0 %v237
    %748 = vmatprep.subr.mxu0 0.0
    %749 = vmatpush1.msra.mxu0 %v238
    %750 = vmatprep.subr.mxu0 0.0
    %751 = vmatpush1.msra.mxu0 %v239
    %752 = vmatprep.subr.mxu0 0.0
    %753 = vmatpush1.msra.mxu0 0.0
    %754 = vmatprep.subr.mxu0 0.0
    %755 = vmatpush1.msra.mxu0 0.0
    %756 = vmatprep.subr.mxu0 0.0
    %757 = vmatpush1.msra.mxu0 0.0
    %758 = vmatprep.subr.mxu0 0.0
    %759 = vmatpush1.msra.mxu0 0.0
    %760 = vmatprep.subr.mxu0 0.0
    %761 = vmatpush1.msra.mxu0 0.0
    %762 = vmatprep.subr.mxu0 0.0
    %763 = vmatpush1.msra.mxu0 0.0
    %764 = vmatprep.subr.mxu0 0.0
    %765 = vmatpush1.msra.mxu0 0.0
    %766 = vmatprep.subr.mxu0 0.0
    %767 = vmatpush1.msra.mxu0 0.0
    %768 = vmatprep.subr.mxu0 0.0
    %769 = vmatpush1.msra.mxu0 0.0
    %770 = vmatprep.subr.mxu0 0.0
    %771 = vmatpush1.msra.mxu0 0.0
    %772 = vmatprep.subr.mxu0 0.0
    %773 = vmatpush1.msra.mxu0 0.0
    %774 = vmatprep.subr.mxu0 0.0
    %775 = vmatpush1.msra.mxu0 0.0
    %776 = vmatprep.subr.mxu0 0.0
    %777 = vmatpush1.msra.mxu0 0.0
    %778 = vmatprep.subr.mxu0 0.0
    %779 = vmatpush1.msra.mxu0 0.0
    %780 = vmatprep.subr.mxu0 0.0
    %781 = vmatpush1.msra.mxu0 0.0
    %782 = vmatprep.subr.mxu0 0.0
    %783 = vmatpush1.msra.mxu0 0.0
    %784 = vmatprep.subr.mxu0 0.0
    %785 = vmatpush1.msra.mxu0 0.0
    %786 = vmatprep.subr.mxu0 0.0
    %787 = vmatpush1.msra.mxu0 0.0
    %788 = vmatprep.subr.mxu0 0.0
    %789 = vmatpush1.msra.mxu0 0.0
    %790 = vmatprep.subr.mxu0 0.0
    %791 = vmatpush1.msra.mxu0 0.0
    %792 = vmatprep.subr.mxu0 0.0
    %793 = vmatpush1.msra.mxu0 0.0
    %794 = vmatprep.subr.mxu0 0.0
    %795 = vmatpush1.msra.mxu0 0.0
    %796 = vmatprep.subr.mxu0 0.0
    %797 = vmatpush1.msra.mxu0 0.0
    %798 = vmatprep.subr.mxu0 0.0
    %799 = vmatpush1.msra.mxu0 0.0
    %800 = vmatprep.subr.mxu0 0.0
    %801 = vmatpush1.msra.mxu0 0.0
    %802 = vmatprep.subr.mxu0 0.0
    %803 = vmatpush1.msra.mxu0 0.0
    %804 = vmatprep.subr.mxu0 0.0
    %805 = vmatpush1.msra.mxu0 0.0
    %806 = vmatprep.subr.mxu0 0.0
    %807 = vmatpush1.msra.mxu0 0.0
    %808 = vmatprep.mubr.f32.mxu0 0.0
    %809 = vmatmul.mubr.f32.gmra.mrb[0].mxu0 %v742
    %v810 = vpop.f32.mrb[0].mxu0
    %v811 = vadd.f32 0.0, %v810
    %v812 = vpop.f32.mrb[0].mxu0
    %813 = vdwg.mxu0
    %v814 = vadd.f32 %v223, %v811
    %v815 = vxor.u32 %v814, 2147483648
    %v816 = vmul.f32 %v815, 1.442695
    %v817 = vpow.pop %v816
    %v818 = vadd.f32 %v817, 1.0
    %v819 = vrcp.pop %v818
    %v820 = vmul.f32 1.0, %v819
    %v821 = vtanh.pop %v814
    %v822 = vmul.f32 %v820, %v732
    %824 = vrot.lane.b32.xlu0 %v821, 64
    %v825 = vpop.permute.xlu0 %824
    %v827 = vmul.f32 %v820, %v825
    %829 = vrot.lane.b32.xlu0 %v827, 32
    %v830 = vpop.permute.xlu0 %829
    %v832 = vadd.f32 %v822, %v830
    %v833 = vtanh.pop %v832
    %835 = vrot.lane.b32.xlu0 %v833, 64
    %v836 = vpop.permute.xlu0 %835
    %v838 = vmul.f32 %v820, %v836
    %840 = vrot.lane.b32.xlu0 %v838, 32
    %v841 = vpop.permute.xlu0 %840
    %v842 = vsel %vm240, %v841, 0
    %844 = vmatprep.subr.mxu0 0.0
    %845 = vmatpush1.msra.mxu0 %v236
    %846 = vmatprep.subr.mxu0 0.0
    %847 = vmatpush1.msra.mxu0 %v237
    %848 = vmatprep.subr.mxu0 0.0
    %849 = vmatpush1.msra.mxu0 %v238
    %850 = vmatprep.subr.mxu0 0.0
    %851 = vmatpush1.msra.mxu0 %v239
    %852 = vmatprep.subr.mxu0 0.0
    %853 = vmatpush1.msra.mxu0 0.0
    %854 = vmatprep.subr.mxu0 0.0
    %855 = vmatpush1.msra.mxu0 0.0
    %856 = vmatprep.subr.mxu0 0.0
    %857 = vmatpush1.msra.mxu0 0.0
    %858 = vmatprep.subr.mxu0 0.0
    %859 = vmatpush1.msra.mxu0 0.0
    %860 = vmatprep.subr.mxu0 0.0
    %861 = vmatpush1.msra.mxu0 0.0
    %862 = vmatprep.subr.mxu0 0.0
    %863 = vmatpush1.msra.mxu0 0.0
    %864 = vmatprep.subr.mxu0 0.0
    %865 = vmatpush1.msra.mxu0 0.0
    %866 = vmatprep.subr.mxu0 0.0
    %867 = vmatpush1.msra.mxu0 0.0
    %868 = vmatprep.subr.mxu0 0.0
    %869 = vmatpush1.msra.mxu0 0.0
    %870 = vmatprep.subr.mxu0 0.0
    %871 = vmatpush1.msra.mxu0 0.0
    %872 = vmatprep.subr.mxu0 0.0
    %873 = vmatpush1.msra.mxu0 0.0
    %874 = vmatprep.subr.mxu0 0.0
    %875 = vmatpush1.msra.mxu0 0.0
    %876 = vmatprep.subr.mxu0 0.0
    %877 = vmatpush1.msra.mxu0 0.0
    %878 = vmatprep.subr.mxu0 0.0
    %879 = vmatpush1.msra.mxu0 0.0
    %880 = vmatprep.subr.mxu0 0.0
    %881 = vmatpush1.msra.mxu0 0.0
    %882 = vmatprep.subr.mxu0 0.0
    %883 = vmatpush1.msra.mxu0 0.0
    %884 = vmatprep.subr.mxu0 0.0
    %885 = vmatpush1.msra.mxu0 0.0
    %886 = vmatprep.subr.mxu0 0.0
    %887 = vmatpush1.msra.mxu0 0.0
    %888 = vmatprep.subr.mxu0 0.0
    %889 = vmatpush1.msra.mxu0 0.0
    %890 = vmatprep.subr.mxu0 0.0
    %891 = vmatpush1.msra.mxu0 0.0
    %892 = vmatprep.subr.mxu0 0.0
    %893 = vmatpush1.msra.mxu0 0.0
    %894 = vmatprep.subr.mxu0 0.0
    %895 = vmatpush1.msra.mxu0 0.0
    %896 = vmatprep.subr.mxu0 0.0
    %897 = vmatpush1.msra.mxu0 0.0
    %898 = vmatprep.subr.mxu0 0.0
    %899 = vmatpush1.msra.mxu0 0.0
    %900 = vmatprep.subr.mxu0 0.0
    %901 = vmatpush1.msra.mxu0 0.0
    %902 = vmatprep.subr.mxu0 0.0
    %903 = vmatpush1.msra.mxu0 0.0
    %904 = vmatprep.subr.mxu0 0.0
    %905 = vmatpush1.msra.mxu0 0.0
    %906 = vmatprep.subr.mxu0 0.0
    %907 = vmatpush1.msra.mxu0 0.0
    %908 = vmatprep.mubr.f32.mxu0 0.0
    %909 = vmatmul.mubr.f32.gmra.mrb[0].mxu0 %v842
    %v910 = vpop.f32.mrb[0].mxu0
    %v911 = vadd.f32 0.0, %v910
    %v912 = vpop.f32.mrb[0].mxu0
    %913 = vdwg.mxu0
    %v914 = vadd.f32 %v228, %v911
    %v915 = vxor.u32 %v914, 2147483648
    %v916 = vmul.f32 %v915, 1.442695
    %v917 = vpow.pop %v916
    %v918 = vadd.f32 %v917, 1.0
    %v919 = vrcp.pop %v918
    %v920 = vmul.f32 1.0, %v919
    %v921 = vtanh.pop %v914
    %v922 = vmul.f32 %v920, %v832
    %924 = vrot.lane.b32.xlu0 %v921, 64
    %v925 = vpop.permute.xlu0 %924
    %v927 = vmul.f32 %v920, %v925
    %929 = vrot.lane.b32.xlu0 %v927, 32
    %v930 = vpop.permute.xlu0 %929
    %v932 = vadd.f32 %v922, %v930
    %v933 = vtanh.pop %v932
    %935 = vrot.lane.b32.xlu0 %v933, 64
    %v936 = vpop.permute.xlu0 %935
    %v938 = vmul.f32 %v920, %v936
    %940 = vrot.lane.b32.xlu0 %v938, 32
    %v941 = vpop.permute.xlu0 %940
    %v942 = vsel %vm240, %v941, 0
    %944 = vmatprep.subr.mxu0 0.0
    %945 = vmatpush1.msra.mxu0 %v236
    %946 = vmatprep.subr.mxu0 0.0
    %947 = vmatpush1.msra.mxu0 %v237
    %948 = vmatprep.subr.mxu0 0.0
    %949 = vmatpush1.msra.mxu0 %v238
    %950 = vmatprep.subr.mxu0 0.0
    %951 = vmatpush1.msra.mxu0 %v239
    %952 = vmatprep.subr.mxu0 0.0
    %953 = vmatpush1.msra.mxu0 0.0
    %954 = vmatprep.subr.mxu0 0.0
    %955 = vmatpush1.msra.mxu0 0.0
    %956 = vmatprep.subr.mxu0 0.0
    %957 = vmatpush1.msra.mxu0 0.0
    %958 = vmatprep.subr.mxu0 0.0
    %959 = vmatpush1.msra.mxu0 0.0
    %960 = vmatprep.subr.mxu0 0.0
    %961 = vmatpush1.msra.mxu0 0.0
    %962 = vmatprep.subr.mxu0 0.0
    %963 = vmatpush1.msra.mxu0 0.0
    %964 = vmatprep.subr.mxu0 0.0
    %965 = vmatpush1.msra.mxu0 0.0
    %966 = vmatprep.subr.mxu0 0.0
    %967 = vmatpush1.msra.mxu0 0.0
    %968 = vmatprep.subr.mxu0 0.0
    %969 = vmatpush1.msra.mxu0 0.0
    %970 = vmatprep.subr.mxu0 0.0
    %971 = vmatpush1.msra.mxu0 0.0
    %972 = vmatprep.subr.mxu0 0.0
    %973 = vmatpush1.msra.mxu0 0.0
    %974 = vmatprep.subr.mxu0 0.0
    %975 = vmatpush1.msra.mxu0 0.0
    %976 = vmatprep.subr.mxu0 0.0
    %977 = vmatpush1.msra.mxu0 0.0
    %978 = vmatprep.subr.mxu0 0.0
    %979 = vmatpush1.msra.mxu0 0.0
    %980 = vmatprep.subr.mxu0 0.0
    %981 = vmatpush1.msra.mxu0 0.0
    %982 = vmatprep.subr.mxu0 0.0
    %983 = vmatpush1.msra.mxu0 0.0
    %984 = vmatprep.subr.mxu0 0.0
    %985 = vmatpush1.msra.mxu0 0.0
    %986 = vmatprep.subr.mxu0 0.0
    %987 = vmatpush1.msra.mxu0 0.0
    %988 = vmatprep.subr.mxu0 0.0
    %989 = vmatpush1.msra.mxu0 0.0
    %990 = vmatprep.subr.mxu0 0.0
    %991 = vmatpush1.msra.mxu0 0.0
    %992 = vmatprep.subr.mxu0 0.0
    %993 = vmatpush1.msra.mxu0 0.0
    %994 = vmatprep.subr.mxu0 0.0
    %995 = vmatpush1.msra.mxu0 0.0
    %996 = vmatprep.subr.mxu0 0.0
    %997 = vmatpush1.msra.mxu0 0.0
    %998 = vmatprep.subr.mxu0 0.0
    %999 = vmatpush1.msra.mxu0 0.0
    %1000 = vmatprep.subr.mxu0 0.0
    %1001 = vmatpush1.msra.mxu0 0.0
    %1002 = vmatprep.subr.mxu0 0.0
    %1003 = vmatpush1.msra.mxu0 0.0
    %1004 = vmatprep.subr.mxu0 0.0
    %1005 = vmatpush1.msra.mxu0 0.0
    %1006 = vmatprep.subr.mxu0 0.0
    %1007 = vmatpush1.msra.mxu0 0.0
    %1008 = vmatprep.mubr.f32.mxu0 0.0
    %1009 = vmatmul.mubr.f32.gmra.mrb[0].mxu0 %v942
    %v1010 = vpop.f32.mrb[0].mxu0
    %v1011 = vadd.f32 0.0, %v1010
    %v1012 = vpop.f32.mrb[0].mxu0
    %1013 = vdwg.mxu0
    %v1014 = vadd.f32 %v233, %v1011
    %v1015 = vxor.u32 %v1014, 2147483648
    %v1016 = vmul.f32 %v1015, 1.442695
    %v1017 = vpow.pop %v1016
    %v1018 = vadd.f32 %v1017, 1.0
    %v1019 = vrcp.pop %v1018
    %v1020 = vmul.f32 1.0, %v1019
    %v1021 = vtanh.pop %v1014
    %v1022 = vmul.f32 %v1020, %v932
    %1024 = vrot.lane.b32.xlu0 %v1021, 64
    %v1025 = vpop.permute.xlu0 %1024
    %v1027 = vmul.f32 %v1020, %v1025
    %1029 = vrot.lane.b32.xlu0 %v1027, 32
    %v1030 = vpop.permute.xlu0 %1029
    %v1032 = vadd.f32 %v1022, %v1030
    %v1033 = vtanh.pop %v1032
    %1035 = vrot.lane.b32.xlu0 %v1033, 64
    %v1036 = vpop.permute.xlu0 %1035
    %v1038 = vmul.f32 %v1020, %v1036
    %v1039 = vld [vmem:[%s1] sm:$0xff]
    %v1040 = vld [vmem:[#allocation7] sm:$0x3]
    %v1041 = vld [vmem:[%s6] sm:$0x1]
    %v1043 = vlaneseq
    %v1044 = vshrl.u32 %v1043, 7
    %v1045 = vsub.s32 0, %v1044
    %v1046 = vrot.slane %v1041, %v1045
    %vm1048 = vcmask 15360
    %v1050 = vsel %vm1048, %v1039, 0
    %vm1052 = vcmask 1041408
    %v1054 = vsel %vm1052, %v1040, 0
    %1056 = vmatprep.subr.mxu0 0.0
    %1057 = vmatpush1.msra.mxu0 %v1054
    %1058 = vmatprep.subr.mxu0 0.0
    %1059 = vmatpush1.msra.mxu0 0.0
    %1060 = vmatprep.subr.mxu0 0.0
    %1061 = vmatpush1.msra.mxu0 0.0
    %1062 = vmatprep.subr.mxu0 0.0
    %1063 = vmatpush1.msra.mxu0 0.0
    %1064 = vmatprep.subr.mxu0 0.0
    %1065 = vmatpush1.msra.mxu0 0.0
    %1066 = vmatprep.subr.mxu0 0.0
    %1067 = vmatpush1.msra.mxu0 0.0
    %1068 = vmatprep.subr.mxu0 0.0
    %1069 = vmatpush1.msra.mxu0 0.0
    %1070 = vmatprep.subr.mxu0 0.0
    %1071 = vmatpush1.msra.mxu0 0.0
    %1072 = vmatprep.subr.mxu0 0.0
    %1073 = vmatpush1.msra.mxu0 0.0
    %1074 = vmatprep.subr.mxu0 0.0
    %1075 = vmatpush1.msra.mxu0 0.0
    %1076 = vmatprep.subr.mxu0 0.0
    %1077 = vmatpush1.msra.mxu0 0.0
    %1078 = vmatprep.subr.mxu0 0.0
    %1079 = vmatpush1.msra.mxu0 0.0
    %1080 = vmatprep.subr.mxu0 0.0
    %1081 = vmatpush1.msra.mxu0 0.0
    %1082 = vmatprep.subr.mxu0 0.0
    %1083 = vmatpush1.msra.mxu0 0.0
    %1084 = vmatprep.subr.mxu0 0.0
    %1085 = vmatpush1.msra.mxu0 0.0
    %1086 = vmatprep.subr.mxu0 0.0
    %1087 = vmatpush1.msra.mxu0 0.0
    %1088 = vmatprep.subr.mxu0 0.0
    %1089 = vmatpush1.msra.mxu0 0.0
    %1090 = vmatprep.subr.mxu0 0.0
    %1091 = vmatpush1.msra.mxu0 0.0
    %1092 = vmatprep.subr.mxu0 0.0
    %1093 = vmatpush1.msra.mxu0 0.0
    %1094 = vmatprep.subr.mxu0 0.0
    %1095 = vmatpush1.msra.mxu0 0.0
    %1096 = vmatprep.subr.mxu0 0.0
    %1097 = vmatpush1.msra.mxu0 0.0
    %1098 = vmatprep.subr.mxu0 0.0
    %1099 = vmatpush1.msra.mxu0 0.0
    %1100 = vmatprep.subr.mxu0 0.0
    %1101 = vmatpush1.msra.mxu0 0.0
    %1102 = vmatprep.subr.mxu0 0.0
    %1103 = vmatpush1.msra.mxu0 0.0
    %1104 = vmatprep.subr.mxu0 0.0
    %1105 = vmatpush1.msra.mxu0 0.0
    %1106 = vmatprep.subr.mxu0 0.0
    %1107 = vmatpush1.msra.mxu0 0.0
    %1108 = vmatprep.subr.mxu0 0.0
    %1109 = vmatpush1.msra.mxu0 0.0
    %1110 = vmatprep.subr.mxu0 0.0
    %1111 = vmatpush1.msra.mxu0 0.0
    %1112 = vmatprep.subr.mxu0 0.0
    %1113 = vmatpush1.msra.mxu0 0.0
    %1114 = vmatprep.subr.mxu0 0.0
    %1115 = vmatpush1.msra.mxu0 0.0
    %1116 = vmatprep.subr.mxu0 0.0
    %1117 = vmatpush1.msra.mxu0 0.0
    %1118 = vmatprep.subr.mxu0 0.0
    %1119 = vmatpush1.msra.mxu0 0.0
    %1120 = vmatprep.mubr.f32.mxu0 0.0
    %1121 = vmatmul.mubr.f32.gmra.mrb[0].mxu0 %v1050
    %v1122 = vpop.f32.mrb[0].mxu0
    %v1123 = vadd.f32 %v1046, %v1122
    %v1124 = vpop.f32.mrb[0].mxu0
    %1125 = vdwg.mxu0
    %v1126 = vld [vmem:[%s7] sm:$0xff]
    %v1127 = vld [vmem:[%s7 + $0x8] sm:$0xff]
    %v1128 = vld [vmem:[%s7 + $0x10] sm:$0xff]
    %v1129 = vld [vmem:[%s7 + $0x18] sm:$0xff]
    %v1130 = vld [vmem:[%s7 + $0x20] sm:$0xff]
    %v1131 = vld [vmem:[%s7 + $0x28] sm:$0xff]
    %v1132 = vld [vmem:[%s7 + $0x30] sm:$0xff]
    %v1133 = vld [vmem:[%s7 + $0x38] sm:$0xff]
    %v1135 = vsel %vm240, %v1123, 0
    %1137 = vmatprep.subr.mxu0 0.0
    %1138 = vmatpush1.msra.mxu0 %v1130
    %1139 = vmatprep.subr.mxu0 0.0
    %1140 = vmatpush1.msra.mxu0 %v1131
    %1141 = vmatprep.subr.mxu0 0.0
    %1142 = vmatpush1.msra.mxu0 %v1132
    %1143 = vmatprep.subr.mxu0 0.0
    %1144 = vmatpush1.msra.mxu0 %v1133
    %1145 = vmatprep.subr.mxu0 0.0
    %1146 = vmatpush1.msra.mxu0 0.0
    %1147 = vmatprep.subr.mxu0 0.0
    %1148 = vmatpush1.msra.mxu0 0.0
    %1149 = vmatprep.subr.mxu0 0.0
    %1150 = vmatpush1.msra.mxu0 0.0
    %1151 = vmatprep.subr.mxu0 0.0
    %1152 = vmatpush1.msra.mxu0 0.0
    %1153 = vmatprep.subr.mxu0 0.0
    %1154 = vmatpush1.msra.mxu0 0.0
    %1155 = vmatprep.subr.mxu0 0.0
    %1156 = vmatpush1.msra.mxu0 0.0
    %1157 = vmatprep.subr.mxu0 0.0
    %1158 = vmatpush1.msra.mxu0 0.0
    %1159 = vmatprep.subr.mxu0 0.0
    %1160 = vmatpush1.msra.mxu0 0.0
    %1161 = vmatprep.subr.mxu0 0.0
    %1162 = vmatpush1.msra.mxu0 0.0
    %1163 = vmatprep.subr.mxu0 0.0
    %1164 = vmatpush1.msra.mxu0 0.0
    %1165 = vmatprep.subr.mxu0 0.0
    %1166 = vmatpush1.msra.mxu0 0.0
    %1167 = vmatprep.subr.mxu0 0.0
    %1168 = vmatpush1.msra.mxu0 0.0
    %1169 = vmatprep.subr.mxu0 0.0
    %1170 = vmatpush1.msra.mxu0 0.0
    %1171 = vmatprep.subr.mxu0 0.0
    %1172 = vmatpush1.msra.mxu0 0.0
    %1173 = vmatprep.subr.mxu0 0.0
    %1174 = vmatpush1.msra.mxu0 0.0
    %1175 = vmatprep.subr.mxu0 0.0
    %1176 = vmatpush1.msra.mxu0 0.0
    %1177 = vmatprep.subr.mxu0 0.0
    %1178 = vmatpush1.msra.mxu0 0.0
    %1179 = vmatprep.subr.mxu0 0.0
    %1180 = vmatpush1.msra.mxu0 0.0
    %1181 = vmatprep.subr.mxu0 0.0
    %1182 = vmatpush1.msra.mxu0 0.0
    %1183 = vmatprep.subr.mxu0 0.0
    %1184 = vmatpush1.msra.mxu0 0.0
    %1185 = vmatprep.subr.mxu0 0.0
    %1186 = vmatpush1.msra.mxu0 0.0
    %1187 = vmatprep.subr.mxu0 0.0
    %1188 = vmatpush1.msra.mxu0 0.0
    %1189 = vmatprep.subr.mxu0 0.0
    %1190 = vmatpush1.msra.mxu0 0.0
    %1191 = vmatprep.subr.mxu0 0.0
    %1192 = vmatpush1.msra.mxu0 0.0
    %1193 = vmatprep.subr.mxu0 0.0
    %1194 = vmatpush1.msra.mxu0 0.0
    %1195 = vmatprep.subr.mxu0 0.0
    %1196 = vmatpush1.msra.mxu0 0.0
    %1197 = vmatprep.subr.mxu0 0.0
    %1198 = vmatpush1.msra.mxu0 0.0
    %1199 = vmatprep.subr.mxu0 0.0
    %1200 = vmatpush1.msra.mxu0 0.0
    %1201 = vmatprep.mubr.f32.mxu0 0.0
    %1202 = vmatmul.mubr.f32.gmra.mrb[0].mxu0 %v1135
    %v1203 = vpop.f32.mrb[0].mxu0
    %v1204 = vadd.f32 0.0, %v1203
    %v1205 = vpop.f32.mrb[0].mxu0
    %1206 = vdwg.mxu0
    %1208 = vrot.lane.b32.xlu0 %v1038, 32
    %v1209 = vpop.permute.xlu0 %1208
    %v1210 = vsel %vm240, %v1209, 0
    %1212 = vmatprep.subr.mxu0 0.0
    %1213 = vmatpush1.msra.mxu0 %v1126
    %1214 = vmatprep.subr.mxu0 0.0
    %1215 = vmatpush1.msra.mxu0 %v1127
    %1216 = vmatprep.subr.mxu0 0.0
    %1217 = vmatpush1.msra.mxu0 %v1128
    %1218 = vmatprep.subr.mxu0 0.0
    %1219 = vmatpush1.msra.mxu0 %v1129
    %1220 = vmatprep.subr.mxu0 0.0
    %1221 = vmatpush1.msra.mxu0 0.0
    %1222 = vmatprep.subr.mxu0 0.0
    %1223 = vmatpush1.msra.mxu0 0.0
    %1224 = vmatprep.subr.mxu0 0.0
    %1225 = vmatpush1.msra.mxu0 0.0
    %1226 = vmatprep.subr.mxu0 0.0
    %1227 = vmatpush1.msra.mxu0 0.0
    %1228 = vmatprep.subr.mxu0 0.0
    %1229 = vmatpush1.msra.mxu0 0.0
    %1230 = vmatprep.subr.mxu0 0.0
    %1231 = vmatpush1.msra.mxu0 0.0
    %1232 = vmatprep.subr.mxu0 0.0
    %1233 = vmatpush1.msra.mxu0 0.0
    %1234 = vmatprep.subr.mxu0 0.0
    %1235 = vmatpush1.msra.mxu0 0.0
    %1236 = vmatprep.subr.mxu0 0.0
    %1237 = vmatpush1.msra.mxu0 0.0
    %1238 = vmatprep.subr.mxu0 0.0
    %1239 = vmatpush1.msra.mxu0 0.0
    %1240 = vmatprep.subr.mxu0 0.0
    %1241 = vmatpush1.msra.mxu0 0.0
    %1242 = vmatprep.subr.mxu0 0.0
    %1243 = vmatpush1.msra.mxu0 0.0
    %1244 = vmatprep.subr.mxu0 0.0
    %1245 = vmatpush1.msra.mxu0 0.0
    %1246 = vmatprep.subr.mxu0 0.0
    %1247 = vmatpush1.msra.mxu0 0.0
    %1248 = vmatprep.subr.mxu0 0.0
    %1249 = vmatpush1.msra.mxu0 0.0
    %1250 = vmatprep.subr.mxu0 0.0
    %1251 = vmatpush1.msra.mxu0 0.0
    %1252 = vmatprep.subr.mxu0 0.0
    %1253 = vmatpush1.msra.mxu0 0.0
    %1254 = vmatprep.subr.mxu0 0.0
    %1255 = vmatpush1.msra.mxu0 0.0
    %1256 = vmatprep.subr.mxu0 0.0
    %1257 = vmatpush1.msra.mxu0 0.0
    %1258 = vmatprep.subr.mxu0 0.0
    %1259 = vmatpush1.msra.mxu0 0.0
    %1260 = vmatprep.subr.mxu0 0.0
    %1261 = vmatpush1.msra.mxu0 0.0
    %1262 = vmatprep.subr.mxu0 0.0
    %1263 = vmatpush1.msra.mxu0 0.0
    %1264 = vmatprep.subr.mxu0 0.0
    %1265 = vmatpush1.msra.mxu0 0.0
    %1266 = vmatprep.subr.mxu0 0.0
    %1267 = vmatpush1.msra.mxu0 0.0
    %1268 = vmatprep.subr.mxu0 0.0
    %1269 = vmatpush1.msra.mxu0 0.0
    %1270 = vmatprep.subr.mxu0 0.0
    %1271 = vmatpush1.msra.mxu0 0.0
    %1272 = vmatprep.subr.mxu0 0.0
    %1273 = vmatpush1.msra.mxu0 0.0
    %1274 = vmatprep.subr.mxu0 0.0
    %1275 = vmatpush1.msra.mxu0 0.0
    %1276 = vmatprep.mubr.f32.mxu0 0.0
    %1277 = vmatmul.mubr.f32.gmra.mrb[0].mxu0 %v1210
    %v1278 = vpop.f32.mrb[0].mxu0
    %v1279 = vadd.f32 %v1204, %v1278
    %v1280 = vpop.f32.mrb[0].mxu0
    %1281 = vdwg.mxu0
    %v1282 = vld [vmem:[%s8] sm:$0x1]
    %v1284 = vlaneseq
    %v1285 = vshrl.u32 %v1284, 7
    %v1286 = vsub.s32 0, %v1285
    %v1287 = vrot.slane %v1282, %v1286
    %v1289 = vadd.f32 %v1279, %v1287
    %v1290 = vmax.f32 %v1289, 0.0
    %v1291 = vld [vmem:[%s9] sm:$0xff]
    %v1292 = vld [vmem:[%s9 + $0x8] sm:$0xff]
    %v1293 = vld [vmem:[%s9 + $0x10] sm:$0xff]
    %v1294 = vld [vmem:[%s9 + $0x18] sm:$0xff]
    %v1295 = vld [vmem:[%s10] sm:$0x1]
    %v1297 = vlaneseq
    %v1298 = vshrl.u32 %v1297, 7
    %v1299 = vsub.s32 0, %v1298
    %v1300 = vrot.slane %v1295, %v1299
    %v1303 = vsel %vm240, %v1290, 0
    %1305 = vmatprep.subr.mxu0 0.0
    %1306 = vmatpush1.msra.mxu0 %v1291
    %1307 = vmatprep.subr.mxu0 0.0
    %1308 = vmatpush1.msra.mxu0 %v1292
    %1309 = vmatprep.subr.mxu0 0.0
    %1310 = vmatpush1.msra.mxu0 %v1293
    %1311 = vmatprep.subr.mxu0 0.0
    %1312 = vmatpush1.msra.mxu0 %v1294
    %1313 = vmatprep.subr.mxu0 0.0
    %1314 = vmatpush1.msra.mxu0 0.0
    %1315 = vmatprep.subr.mxu0 0.0
    %1316 = vmatpush1.msra.mxu0 0.0
    %1317 = vmatprep.subr.mxu0 0.0
    %1318 = vmatpush1.msra.mxu0 0.0
    %1319 = vmatprep.subr.mxu0 0.0
    %1320 = vmatpush1.msra.mxu0 0.0
    %1321 = vmatprep.subr.mxu0 0.0
    %1322 = vmatpush1.msra.mxu0 0.0
    %1323 = vmatprep.subr.mxu0 0.0
    %1324 = vmatpush1.msra.mxu0 0.0
    %1325 = vmatprep.subr.mxu0 0.0
    %1326 = vmatpush1.msra.mxu0 0.0
    %1327 = vmatprep.subr.mxu0 0.0
    %1328 = vmatpush1.msra.mxu0 0.0
    %1329 = vmatprep.subr.mxu0 0.0
    %1330 = vmatpush1.msra.mxu0 0.0
    %1331 = vmatprep.subr.mxu0 0.0
    %1332 = vmatpush1.msra.mxu0 0.0
    %1333 = vmatprep.subr.mxu0 0.0
    %1334 = vmatpush1.msra.mxu0 0.0
    %1335 = vmatprep.subr.mxu0 0.0
    %1336 = vmatpush1.msra.mxu0 0.0
    %1337 = vmatprep.subr.mxu0 0.0
    %1338 = vmatpush1.msra.mxu0 0.0
    %1339 = vmatprep.subr.mxu0 0.0
    %1340 = vmatpush1.msra.mxu0 0.0
    %1341 = vmatprep.subr.mxu0 0.0
    %1342 = vmatpush1.msra.mxu0 0.0
    %1343 = vmatprep.subr.mxu0 0.0
    %1344 = vmatpush1.msra.mxu0 0.0
    %1345 = vmatprep.subr.mxu0 0.0
    %1346 = vmatpush1.msra.mxu0 0.0
    %1347 = vmatprep.subr.mxu0 0.0
    %1348 = vmatpush1.msra.mxu0 0.0
    %1349 = vmatprep.subr.mxu0 0.0
    %1350 = vmatpush1.msra.mxu0 0.0
    %1351 = vmatprep.subr.mxu0 0.0
    %1352 = vmatpush1.msra.mxu0 0.0
    %1353 = vmatprep.subr.mxu0 0.0
    %1354 = vmatpush1.msra.mxu0 0.0
    %1355 = vmatprep.subr.mxu0 0.0
    %1356 = vmatpush1.msra.mxu0 0.0
    %1357 = vmatprep.subr.mxu0 0.0
    %1358 = vmatpush1.msra.mxu0 0.0
    %1359 = vmatprep.subr.mxu0 0.0
    %1360 = vmatpush1.msra.mxu0 0.0
    %1361 = vmatprep.subr.mxu0 0.0
    %1362 = vmatpush1.msra.mxu0 0.0
    %1363 = vmatprep.subr.mxu0 0.0
    %1364 = vmatpush1.msra.mxu0 0.0
    %1365 = vmatprep.subr.mxu0 0.0
    %1366 = vmatpush1.msra.mxu0 0.0
    %1367 = vmatprep.subr.mxu0 0.0
    %1368 = vmatpush1.msra.mxu0 0.0
    %1369 = vmatprep.mubr.f32.mxu0 0.0
    %1370 = vmatmul.mubr.f32.gmra.mrb[0].mxu0 %v1303
    %v1371 = vpop.f32.mrb[0].mxu0
    %v1372 = vadd.f32 %v1300, %v1371
    %v1373 = vpop.f32.mrb[0].mxu0
    %1374 = vdwg.mxu0
    %v1375 = vmax.f32 %v1372, 0.0
    %v1376 = vld [vmem:[%s11] sm:$0xff]
    %v1377 = vld [vmem:[%s11 + $0x8] sm:$0xff]
    %v1378 = vld [vmem:[%s11 + $0x10] sm:$0xff]
    %v1379 = vld [vmem:[%s11 + $0x18] sm:$0xff]
    %v1380 = vld [vmem:[%s12] sm:$0x1]
    %v1382 = vlaneseq
    %v1383 = vshrl.u32 %v1382, 7
    %v1384 = vsub.s32 0, %v1383
    %v1385 = vrot.slane %v1380, %v1384
    %v1388 = vsel %vm240, %v1375, 0
    %1390 = vmatprep.subr.mxu0 0.0
    %1391 = vmatpush1.msra.mxu0 %v1376
    %1392 = vmatprep.subr.mxu0 0.0
    %1393 = vmatpush1.msra.mxu0 %v1377
    %1394 = vmatprep.subr.mxu0 0.0
    %1395 = vmatpush1.msra.mxu0 %v1378
    %1396 = vmatprep.subr.mxu0 0.0
    %1397 = vmatpush1.msra.mxu0 %v1379
    %1398 = vmatprep.subr.mxu0 0.0
    %1399 = vmatpush1.msra.mxu0 0.0
    %1400 = vmatprep.subr.mxu0 0.0
    %1401 = vmatpush1.msra.mxu0 0.0
    %1402 = vmatprep.subr.mxu0 0.0
    %1403 = vmatpush1.msra.mxu0 0.0
    %1404 = vmatprep.subr.mxu0 0.0
    %1405 = vmatpush1.msra.mxu0 0.0
    %1406 = vmatprep.subr.mxu0 0.0
    %1407 = vmatpush1.msra.mxu0 0.0
    %1408 = vmatprep.subr.mxu0 0.0
    %1409 = vmatpush1.msra.mxu0 0.0
    %1410 = vmatprep.subr.mxu0 0.0
    %1411 = vmatpush1.msra.mxu0 0.0
    %1412 = vmatprep.subr.mxu0 0.0
    %1413 = vmatpush1.msra.mxu0 0.0
    %1414 = vmatprep.subr.mxu0 0.0
    %1415 = vmatpush1.msra.mxu0 0.0
    %1416 = vmatprep.subr.mxu0 0.0
    %1417 = vmatpush1.msra.mxu0 0.0
    %1418 = vmatprep.subr.mxu0 0.0
    %1419 = vmatpush1.msra.mxu0 0.0
    %1420 = vmatprep.subr.mxu0 0.0
    %1421 = vmatpush1.msra.mxu0 0.0
    %1422 = vmatprep.subr.mxu0 0.0
    %1423 = vmatpush1.msra.mxu0 0.0
    %1424 = vmatprep.subr.mxu0 0.0
    %1425 = vmatpush1.msra.mxu0 0.0
    %1426 = vmatprep.subr.mxu0 0.0
    %1427 = vmatpush1.msra.mxu0 0.0
    %1428 = vmatprep.subr.mxu0 0.0
    %1429 = vmatpush1.msra.mxu0 0.0
    %1430 = vmatprep.subr.mxu0 0.0
    %1431 = vmatpush1.msra.mxu0 0.0
    %1432 = vmatprep.subr.mxu0 0.0
    %1433 = vmatpush1.msra.mxu0 0.0
    %1434 = vmatprep.subr.mxu0 0.0
    %1435 = vmatpush1.msra.mxu0 0.0
    %1436 = vmatprep.subr.mxu0 0.0
    %1437 = vmatpush1.msra.mxu0 0.0
    %1438 = vmatprep.subr.mxu0 0.0
    %1439 = vmatpush1.msra.mxu0 0.0
    %1440 = vmatprep.subr.mxu0 0.0
    %1441 = vmatpush1.msra.mxu0 0.0
    %1442 = vmatprep.subr.mxu0 0.0
    %1443 = vmatpush1.msra.mxu0 0.0
    %1444 = vmatprep.subr.mxu0 0.0
    %1445 = vmatpush1.msra.mxu0 0.0
    %1446 = vmatprep.subr.mxu0 0.0
    %1447 = vmatpush1.msra.mxu0 0.0
    %1448 = vmatprep.subr.mxu0 0.0
    %1449 = vmatpush1.msra.mxu0 0.0
    %1450 = vmatprep.subr.mxu0 0.0
    %1451 = vmatpush1.msra.mxu0 0.0
    %1452 = vmatprep.subr.mxu0 0.0
    %1453 = vmatpush1.msra.mxu0 0.0
    %1454 = vmatprep.mubr.f32.mxu0 0.0
    %1455 = vmatmul.mubr.f32.gmra.mrb[0].mxu0 %v1388
    %v1456 = vpop.f32.mrb[0].mxu0
    %v1457 = vadd.f32 %v1385, %v1456
    %v1458 = vpop.f32.mrb[0].mxu0
    %1459 = vdwg.mxu0
    %v1460 = vmax.f32 %v1457, 0.0
    %v1461 = vld [vmem:[%s13] sm:$0xff]
    %v1462 = vld [vmem:[%s13 + $0x8] sm:$0xff]
    %v1463 = vld [vmem:[%s13 + $0x10] sm:$0xff]
    %v1464 = vld [vmem:[%s13 + $0x18] sm:$0xff]
    %v1465 = vld [vmem:[%s13 + $0x20] sm:$0xff]
    %v1466 = vld [vmem:[%s13 + $0x28] sm:$0xff]
    %v1467 = vld [vmem:[%s13 + $0x30] sm:$0xff]
    %v1468 = vld [vmem:[%s13 + $0x38] sm:$0xff]
    %v1469 = vld [vmem:[%s14] sm:$0x3]
    %v1471 = vlaneseq
    %v1472 = vshrl.u32 %v1471, 7
    %v1473 = vsub.s32 0, %v1472
    %v1474 = vrot.slane %v1469, %v1473
    %v1475 = vlaneseq
    %v1476 = vshrl.u32 %v1475, 7
    %v1477 = vsub.s32 1, %v1476
    %v1478 = vrot.slane %v1469, %v1477
    %v1482 = vsel %vm240, %v1460, 0
    %1484 = vmatprep.subr.mxu0 %v1462
    %1485 = vmatpush1.msra.mxu0 %v1461
    %1486 = vmatprep.subr.mxu0 %v1464
    %1487 = vmatpush1.msra.mxu0 %v1463
    %1488 = vmatprep.subr.mxu0 %v1466
    %1489 = vmatpush1.msra.mxu0 %v1465
    %1490 = vmatprep.subr.mxu0 %v1468
    %1491 = vmatpush1.msra.mxu0 %v1467
    %1492 = vmatprep.subr.mxu0 0.0
    %1493 = vmatpush1.msra.mxu0 0.0
    %1494 = vmatprep.subr.mxu0 0.0
    %1495 = vmatpush1.msra.mxu0 0.0
    %1496 = vmatprep.subr.mxu0 0.0
    %1497 = vmatpush1.msra.mxu0 0.0
    %1498 = vmatprep.subr.mxu0 0.0
    %1499 = vmatpush1.msra.mxu0 0.0
    %1500 = vmatprep.subr.mxu0 0.0
    %1501 = vmatpush1.msra.mxu0 0.0
    %1502 = vmatprep.subr.mxu0 0.0
    %1503 = vmatpush1.msra.mxu0 0.0
    %1504 = vmatprep.subr.mxu0 0.0
    %1505 = vmatpush1.msra.mxu0 0.0
    %1506 = vmatprep.subr.mxu0 0.0
    %1507 = vmatpush1.msra.mxu0 0.0
    %1508 = vmatprep.subr.mxu0 0.0
    %1509 = vmatpush1.msra.mxu0 0.0
    %1510 = vmatprep.subr.mxu0 0.0
    %1511 = vmatpush1.msra.mxu0 0.0
    %1512 = vmatprep.subr.mxu0 0.0
    %1513 = vmatpush1.msra.mxu0 0.0
    %1514 = vmatprep.subr.mxu0 0.0
    %1515 = vmatpush1.msra.mxu0 0.0
    %1516 = vmatprep.subr.mxu0 0.0
    %1517 = vmatpush1.msra.mxu0 0.0
    %1518 = vmatprep.subr.mxu0 0.0
    %1519 = vmatpush1.msra.mxu0 0.0
    %1520 = vmatprep.subr.mxu0 0.0
    %1521 = vmatpush1.msra.mxu0 0.0
    %1522 = vmatprep.subr.mxu0 0.0
    %1523 = vmatpush1.msra.mxu0 0.0
    %1524 = vmatprep.subr.mxu0 0.0
    %1525 = vmatpush1.msra.mxu0 0.0
    %1526 = vmatprep.subr.mxu0 0.0
    %1527 = vmatpush1.msra.mxu0 0.0
    %1528 = vmatprep.subr.mxu0 0.0
    %1529 = vmatpush1.msra.mxu0 0.0
    %1530 = vmatprep.subr.mxu0 0.0
    %1531 = vmatpush1.msra.mxu0 0.0
    %1532 = vmatprep.subr.mxu0 0.0
    %1533 = vmatpush1.msra.mxu0 0.0
    %1534 = vmatprep.subr.mxu0 0.0
    %1535 = vmatpush1.msra.mxu0 0.0
    %1536 = vmatprep.subr.mxu0 0.0
    %1537 = vmatpush1.msra.mxu0 0.0
    %1538 = vmatprep.subr.mxu0 0.0
    %1539 = vmatpush1.msra.mxu0 0.0
    %1540 = vmatprep.subr.mxu0 0.0
    %1541 = vmatpush1.msra.mxu0 0.0
    %1542 = vmatprep.subr.mxu0 0.0
    %1543 = vmatpush1.msra.mxu0 0.0
    %1544 = vmatprep.subr.mxu0 0.0
    %1545 = vmatpush1.msra.mxu0 0.0
    %1546 = vmatprep.subr.mxu0 0.0
    %1547 = vmatpush1.msra.mxu0 0.0
    %1548 = vmatprep.mubr.f32.mxu0 0.0
    %1549 = vmatmul.mubr.f32.gmra.mrb[0].mxu0 %v1482
    %v1550 = vpop.f32.mrb[0].mxu0
    %v1551 = vadd.f32 %v1474, %v1550
    %v1552 = vpop.f32.mrb[0].mxu0
    %v1553 = vadd.f32 %v1478, %v1552
    %1554 = vdwg.mxu0
    %1556 = vrot.lane.b32.xlu0 %v1551, 77
    %v1557 = vpop.permute.xlu0 %1556
    %v1559 = vmax.f32 %v1551, %v1557
    %1561 = vrot.lane.b32.xlu0 %v1551, 26
    %v1562 = vpop.permute.xlu0 %1561
    %1563 = vrot.lane.b32.xlu0 %v1553, 26
    %v1564 = vpop.permute.xlu0 %1563
    %vm1565 = vcmask 211968
    %v1566 = vsel %vm1565, %v1562, %v1564
    %v1568 = vmax.f32 %v1559, %v1566
    %1569 = vrot.lane.b32.xlu0 %v1553, 103
    %v1570 = vpop.permute.xlu0 %1569
    %v1572 = vmax.f32 %v1568, %v1570
    %v1573 = vsub.f32 %v1551, %v1572
    %v1574 = vmul.f32 %v1573, 1.442695
    %v1575 = vpow.pop %v1574
    %1577 = vrot.lane.b32.xlu0 %v1572, 51
    %v1578 = vpop.permute.xlu0 %1577
    %v1580 = vsub.f32 %v1551, %v1578
    %v1581 = vmul.f32 %v1580, 1.442695
    %v1582 = vpow.pop %v1581
    %1583 = vrot.lane.b32.xlu0 %v1572, 102
    %v1584 = vpop.permute.xlu0 %1583
    %v1586 = vsub.f32 %v1551, %v1584
    %v1587 = vsub.f32 %v1553, %v1584
    %v1588 = vmul.f32 %v1586, 1.442695
    %v1589 = vpow.pop %v1588
    %v1590 = vmul.f32 %v1587, 1.442695
    %v1591 = vpow.pop %v1590
    %1592 = vrot.lane.b32.xlu0 %v1572, 25
    %v1593 = vpop.permute.xlu0 %1592
    %v1595 = vsub.f32 %v1553, %v1593
    %v1596 = vmul.f32 %v1595, 1.442695
    %v1597 = vpow.pop %v1596
    %1599 = vrot.lane.b32.xlu0 %v1582, 77
    %v1600 = vpop.permute.xlu0 %1599
    %v1602 = vadd.f32 %v1575, %v1600
    %1605 = vrot.lane.b32.xlu0 %v1589, 26
    %v1606 = vpop.permute.xlu0 %1605
    %1607 = vrot.lane.b32.xlu0 %v1591, 26
    %v1608 = vpop.permute.xlu0 %1607
    %v1609 = vsel %vm1565, %v1606, %v1608
    %v1611 = vadd.f32 %v1602, %v1609
    %1613 = vrot.lane.b32.xlu0 %v1597, 103
    %v1614 = vpop.permute.xlu0 %1613
    %v1616 = vadd.f32 %v1611, %v1614
    %v1617 = vrcp.pop %v1616
    %v1618 = vmul.f32 %v1575, %v1617
    %1620 = vrot.lane.b32.xlu0 %v1617, 51
    %v1621 = vpop.permute.xlu0 %1620
    %v1623 = vmul.f32 %v1582, %v1621
    %1624 = vrot.lane.b32.xlu0 %v1617, 102
    %v1625 = vpop.permute.xlu0 %1624
    %v1627 = vmul.f32 %v1589, %v1625
    %v1628 = vmul.f32 %v1591, %v1625
    %1629 = vrot.lane.b32.xlu0 %v1617, 25
    %v1630 = vpop.permute.xlu0 %1629
    %v1632 = vmul.f32 %v1597, %v1630
    %vm1633 = vcmask 416768
    %v1634 = vsel %vm1633, %v1618, %v1623
    %vm1635 = vcmask 834560
    %v1636 = vsel %vm1635, %v1634, %v1627
    %vm1637 = vcmask 203776
    %v1638 = vsel %vm1637, %v1628, %v1632
    %1639 = vst [vmem:[#allocation8] sm:$0xff] %v1636
    %vm1640 = vcmask 621568
    %1641 = vst.msk [vmem:[#allocation8 + $0x8] sm:$0xff] %vm1640, %v1638
    // Predicated region
    $region74: #{tpu_custom_call.1} parent=1 // pred_check
      _
    $region75: #{tpu_custom_call.1} parent=1 // pred_check_branch
      %1643 = sbr.rel (0) target = $region77
    $region76: #{tpu_custom_call.1} parent=1 // pred_region
      %s1645 = ssub.s32 256, 256
      %1646 = vsyncadd [#allocation4], %s1645
      %s1648 = sshll.u32 [#allocation8], 4
      %s1649 = int_to_ptr.vmem [resolvable:$true] %s1648
      %1651 = dma.vmem_to_hbm [thread:$0]  %s1649, 256, %s15, [#allocation4]
    $region77: #{tpu_custom_call.1} parent=1 // pred_fallthru
      _
    // Predicated region
    $region78: #{tpu_custom_call.1} parent=1 // pred_check
      _
    $region79: #{tpu_custom_call.1} parent=1 // pred_check_branch
      %1653 = sbr.rel (0) target = $region81
    $region80: #{tpu_custom_call.1} parent=1 // pred_region
      %1654 = dma.done [#allocation4], 256
    $region81: #{tpu_custom_call.1} parent=1 // pred_fallthru
      _
    %1655 = vsyncpa [#allocation3], 1
    %1656 = vsyncpa [#allocation6], 1
    %1657 = vsyncpa [#allocation4], 1

</llo_original>
